<compile_context>
chip_gen: v7x
topology: tpu7x:2x2x1
jax: 0.10.0
libtpu: 0.0.40
codegen_flags: <defaults>
</compile_context>

<pallas_src>
import functools

import jax
import jax.numpy as jnp
from jax import lax
from jax.experimental import pallas as pl
from jax.experimental.pallas import tpu as pltpu


# --------------------------------------------------------------------------- #
# Kernel bodies
# --------------------------------------------------------------------------- #
def _compute_dtype(x_dtype):
    # bf16 goes straight into the MXU (f32 accumulation); everything else via f32.
    if jnp.dtype(x_dtype) == jnp.dtype(jnp.bfloat16):
        return jnp.bfloat16
    return jnp.float32


def _build_filter_mats(k_ref, kernel_size, final_size, stride, width, dtype):
    """M_u[w, j] = k[u, w - j*stride] if 0 <= w - j*stride < K else 0 ; shape (W, F)."""
    K, F, s = kernel_size, final_size, stride
    w_idx = lax.broadcasted_iota(jnp.int32, (width, F), 0)
    j_idx = lax.broadcasted_iota(jnp.int32, (width, F), 1)
    v_idx = w_idx - j_idx * s
    taps = [k_ref[t] for t in range(K * K)]          # scalar SMEM reads, hoisted
    mats = []
    for u in range(K):
        m = jnp.zeros((width, F), jnp.float32)
        for v in range(K):
            m = m + (v_idx == v).astype(jnp.float32) * taps[u * K + v]
        mats.append(m.astype(dtype))
    return mats


def _plane_kernel(k_ref, x_ref, o_ref, *, kernel_size, final_size, stride):
    """One grid step: TB whole image planes (TB, H, W) -> packed (TB, F*F)."""
    K, F, s = kernel_size, final_size, stride
    TB, _, W = x_ref.shape
    cdt = _compute_dtype(x_ref.dtype)
    mats = _build_filter_mats(k_ref, K, F, s, W, cdt)

    out_rows = []
    for i in range(F):                                # static unroll, F is small
        acc = jnp.zeros((TB, F), jnp.float32)
        for u in range(K):
            row = x_ref[:, i * s + u, :].astype(cdt)  # (TB, W)
            acc = acc + jnp.dot(row, mats[u], preferred_element_type=jnp.float32)
        out_rows.append(acc)
    o_ref[...] = jnp.concatenate(out_rows, axis=1).astype(o_ref.dtype)


def _band_kernel(k_ref, x_hbm, o_ref, band_buf, sem, *, kernel_size, final_size, stride):
    """One grid step: TB planes, manually DMAing only the K-row bands that are read."""
    K, F, s = kernel_size, final_size, stride
    _, TB, _, W = band_buf.shape
    cdt = _compute_dtype(band_buf.dtype)

    p0 = pl.multiple_of(pl.program_id(0) * TB, TB)

    def band_copy(i, slot):
        return pltpu.make_async_copy(
            x_hbm.at[pl.ds(p0, TB), pl.ds(i * s, K), :],
            band_buf.at[slot],
            sem.at[slot],
        )

    band_copy(0, 0).start()
    # Building the filter matrices overlaps with the first band DMA.
    mats = _build_filter_mats(k_ref, K, F, s, W, cdt)

    out_rows = []
    for i in range(F):                                # static unroll, F is small
        slot = i % 2
        if i + 1 < F:
            band_copy(i + 1, 1 - slot).start()        # prefetch next band
        band_copy(i, slot).wait()
        acc = jnp.zeros((TB, F), jnp.float32)
        for u in range(K):
            row = band_buf[slot, :, u, :].astype(cdt)  # (TB, W)
            acc = acc + jnp.dot(row, mats[u], preferred_element_type=jnp.float32)
        out_rows.append(acc)
    o_ref[...] = jnp.concatenate(out_rows, axis=1).astype(o_ref.dtype)


# --------------------------------------------------------------------------- #
# Tile-size / budget selection
# --------------------------------------------------------------------------- #
_MAX_TB = 512  # plenty of sublanes / MXU rows; keeps live temporaries modest


def _vmem_limit_bytes():
    cap = 64 * 1024 * 1024                            # conservative default (v7x physical)
    try:
        cap = int(pltpu.get_tpu_info().vmem_capacity_bytes)
    except Exception:
        pass
    # ~3/4 of physical as the scoped limit: ~48 MiB on v7x, ~96 MiB on v5e/v6e.
    return max(32 * 1024 * 1024, min((cap * 3) // 4, 112 * 1024 * 1024))


def _cores_per_chip():
    try:
        kind = jax.devices()[0].device_kind.lower()
    except Exception:
        return 1
    return 2 if "v7" in kind else 1


def _cap_from_budget(bytes_per_plane, vmem_limit):
    # Double-buffered input tile gets ~half of the scoped VMEM budget.
    return max(1, min((vmem_limit // 2) // (2 * max(1, bytes_per_plane)), _MAX_TB))


def _pick_plane_tb(bc, h, w, itemsize, vmem_limit):
    cap = _cap_from_budget(h * w * itemsize, vmem_limit)
    if _cores_per_chip() >= 2 and bc >= 16:
        cap = min(cap, max(8, bc // 2))               # keep both v7x TensorCores busy
    if bc <= cap:
        return bc                                     # single step, block == full array
    tb = (cap // 8) * 8                               # multiple of 8 (sublane alignment)
    if tb == 0:
        tb = min(8, bc)                               # absurdly large planes; may exceed budget
    return tb


def _pick_band_tb(bc, kernel_size, w, itemsize, vmem_limit):
    cap = _cap_from_budget(kernel_size * w * itemsize, vmem_limit)
    if _cores_per_chip() >= 2 and bc >= 16:
        cap = min(cap, max(8, bc // 2))
    if bc <= cap:
        return bc
    # Manual band DMA needs tb | bc (no ragged masked block on this path):
    # largest multiple-of-8 divisor first, then any divisor >= 8.
    for d in range((min(cap, bc - 1) // 8) * 8, 7, -8):
        if bc % d == 0:
            return d
    for d in range(min(cap, bc - 1), 7, -1):
        if bc % d == 0:
            return d
    return None                                       # caller falls back to the plane path


# --------------------------------------------------------------------------- #
# Public wrapper
# --------------------------------------------------------------------------- #
def simple_downsampler(imgs, kernel_params, final_size, guidance=None):
    """JAX/Pallas equivalent of SimpleDownsampler.forward (guidance is ignored)."""
    del guidance
    b, c, h, w = imgs.shape
    ks = kernel_params.shape[0]

    assert final_size > 1, "final_size must be > 1 (stride derivation divides by final_size - 1)"
    stride = (h - ks) // (final_size - 1)
    assert stride >= 1, "derived stride must be >= 1"
    assert (final_size - 1) * stride + ks <= h, "height too small for derived stride"
    assert (final_size - 1) * stride + ks <= w, "width too small for derived stride"

    # get_kernel(): abs + normalize; flattened to 1-D for SMEM.
    k = jnp.abs(kernel_params.astype(jnp.float32))
    k = (k / jnp.sum(k)).reshape(-1)                  # (K*K,)

    bc = b * c
    ff = final_size * final_size
    x_flat = imgs.reshape(bc, h, w)
    itemsize = jnp.dtype(imgs.dtype).itemsize
    vmem_limit = _vmem_limit_bytes()

    # Output dtype follows imgs.dtype (accumulation is always f32).  The PyTorch
    # module only runs with f32 inputs (f32 kernel_params), where this matches exactly.
    out_dtype = imgs.dtype

    use_band = stride > ks                            # only then are input rows skipped
    tb = None
    if use_band:
        tb = _pick_band_tb(bc, ks, w, itemsize, vmem_limit)
        use_band = tb is not None
    if not use_band:
        tb = _pick_plane_tb(bc, h, w, itemsize, vmem_limit)

    cparams = pltpu.CompilerParams(
        dimension_semantics=("parallel",),
        vmem_limit_bytes=vmem_limit,
    )

    if use_band:
        kern = functools.partial(_band_kernel, kernel_size=ks,
                                 final_size=final_size, stride=stride)
        out = pl.pallas_call(
            kern,
            grid=(bc // tb,),
            in_specs=[
                pl.BlockSpec(memory_space=pltpu.MemorySpace.SMEM),   # flat taps (K*K,)
                pl.BlockSpec(memory_space=pl.ANY),                   # planes stay in HBM
            ],
            out_specs=pl.BlockSpec((tb, ff), lambda i: (i, 0)),
            out_shape=jax.ShapeDtypeStruct((bc, ff), out_dtype),
            scratch_shapes=[
                pltpu.VMEM((2, tb, ks, w), imgs.dtype),              # double-buffered bands
                pltpu.SemaphoreType.DMA((2,)),
            ],
            compiler_params=cparams,
        )(k, x_flat)
    else:
        kern = functools.partial(_plane_kernel, kernel_size=ks,
                                 final_size=final_size, stride=stride)
        out = pl.pallas_call(
            kern,
            grid=(pl.cdiv(bc, tb),),                  # ragged last block is masked by Pallas
            in_specs=[
                pl.BlockSpec(memory_space=pltpu.MemorySpace.SMEM),
                pl.BlockSpec((tb, h, w), lambda i: (i, 0, 0)),
            ],
            out_specs=pl.BlockSpec((tb, ff), lambda i: (i, 0)),
            out_shape=jax.ShapeDtypeStruct((bc, ff), out_dtype),
            compiler_params=cparams,
        )(k, x_flat)

    # (bc, F*F) row-major == (b*c, F, F) row-major.
    return out.reshape(b, c, final_size, final_size)


# --------------------------------------------------------------------------- #
# Reference + self-test
# --------------------------------------------------------------------------- #
def _reference(imgs, kernel_params, final_size):
    b, c, h, w = imgs.shape
    ks = kernel_params.shape[0]
    stride = (h - ks) // (final_size - 1)
    k = jnp.abs(kernel_params.astype(jnp.float32))
    k = k / jnp.sum(k)
    x = imgs.astype(jnp.float32).reshape(b * c, 1, h, w)
    out = lax.conv_general_dilated(x, k[None, None, :, :], (stride, stride), "VALID")
    return out[:, :, :final_size, :final_size].reshape(b, c, final_size, final_size)


if __name__ == "__main__":
    key = jax.random.PRNGKey(0)
    k1, k2, k3 = jax.random.split(key, 3)

    kernel_size = 4
    # __init__ sets kernel_params = ones(K, K); perturb deterministically so the
    # normalization path is exercised non-trivially.
    kernel_params = jnp.ones((kernel_size, kernel_size), jnp.float32) \
        + 0.1 * jax.random.normal(k2, (kernel_size, kernel_size), dtype=jnp.float32)

    # Case 1: stride == K  -> full-plane BlockSpec path (f32).
    b, c, h, w, final_size = 2, 4, 16, 16, 4              # stride = (16-4)//3 = 4
    imgs = jax.random.normal(k1, (b, c, h, w), dtype=jnp.float32)
    out = jax.block_until_ready(simple_downsampler(imgs, kernel_params, final_size))
    ref = _reference(imgs, kernel_params, final_size)
    assert out.shape == (b, c, final_size, final_size), out.shape
    assert jnp.allclose(out, ref, atol=1e-3, rtol=1e-3), float(jnp.max(jnp.abs(out - ref)))

    # Case 2: stride > K  -> manual band-DMA path (only K of every `stride` rows fetched).
    b2, c2, h2, w2, final2 = 2, 4, 36, 36, 3              # stride = (36-4)//2 = 16
    imgs2 = jax.random.normal(k3, (b2, c2, h2, w2), dtype=jnp.float32)
    out2 = jax.block_until_ready(simple_downsampler(imgs2, kernel_params, final2))
    ref2 = _reference(imgs2, kernel_params, final2)
    assert out2.shape == (b2, c2, final2, final2), out2.shape
    assert jnp.allclose(out2, ref2, atol=1e-3, rtol=1e-3), float(jnp.max(jnp.abs(out2 - ref2)))

    # Case 3: bf16 input -> bf16 rows feed the MXU directly (f32 accumulation).
    imgs_bf16 = imgs.astype(jnp.bfloat16)
    out3 = jax.block_until_ready(simple_downsampler(imgs_bf16, kernel_params, final_size))
    ref3 = _reference(imgs_bf16, kernel_params, final_size)
    assert jnp.allclose(out3.astype(jnp.float32), ref3, atol=5e-2, rtol=5e-2), \
        float(jnp.max(jnp.abs(out3.astype(jnp.float32) - ref3)))

    print("KERNEL_OK")
</pallas_src>

<mosaic_0001>
module attributes {stable_mosaic.version = 11 : i64} {
  func.func @_plane_kernel(%arg0: i32, %arg1: memref<16xf32, #tpu.memory_space<smem>>, %arg2: memref<8x16x16xf32, #tpu.memory_space<vmem>>, %arg3: memref<8x16xf32, #tpu.memory_space<vmem>>) attributes {dimension_semantics = [#tpu.dimension_semantics<parallel>], iteration_bounds = array<i64: 1>, scalar_prefetch = 0 : i64, scratch_operands = 0 : i64, tpu.core_type = #tpu.core_type<tc>, window_params = [{transform_indices = @transform_0, window_bounds = array<i64: 16>}, {transform_indices = @transform_1, window_bounds = array<i64: 8, 16, 16>}, {transform_indices = @transform_2, window_bounds = array<i64: 8, 16>}]} {
    %0 = tpu.iota {dimensions = array<i32: 0>} : vector<16x4xi32>
    %1 = tpu.iota {dimensions = array<i32: 1>} : vector<16x4xi32>
    %c4_i32 = arith.constant 4 : i32
    %2 = vector.broadcast %c4_i32 : i32 to vector<16x4xi32>
    %3 = arith.muli %1, %2 : vector<16x4xi32>
    %4 = arith.subi %0, %3 : vector<16x4xi32>
    %c0 = arith.constant 0 : index
    %5 = memref.load %arg1[%c0] : memref<16xf32, #tpu.memory_space<smem>>
    %c1 = arith.constant 1 : index
    %6 = memref.load %arg1[%c1] : memref<16xf32, #tpu.memory_space<smem>>
    %c2 = arith.constant 2 : index
    %7 = memref.load %arg1[%c2] : memref<16xf32, #tpu.memory_space<smem>>
    %c3 = arith.constant 3 : index
    %8 = memref.load %arg1[%c3] : memref<16xf32, #tpu.memory_space<smem>>
    %c4 = arith.constant 4 : index
    %9 = memref.load %arg1[%c4] : memref<16xf32, #tpu.memory_space<smem>>
    %c5 = arith.constant 5 : index
    %10 = memref.load %arg1[%c5] : memref<16xf32, #tpu.memory_space<smem>>
    %c6 = arith.constant 6 : index
    %11 = memref.load %arg1[%c6] : memref<16xf32, #tpu.memory_space<smem>>
    %c7 = arith.constant 7 : index
    %12 = memref.load %arg1[%c7] : memref<16xf32, #tpu.memory_space<smem>>
    %c8 = arith.constant 8 : index
    %13 = memref.load %arg1[%c8] : memref<16xf32, #tpu.memory_space<smem>>
    %c9 = arith.constant 9 : index
    %14 = memref.load %arg1[%c9] : memref<16xf32, #tpu.memory_space<smem>>
    %c10 = arith.constant 10 : index
    %15 = memref.load %arg1[%c10] : memref<16xf32, #tpu.memory_space<smem>>
    %c11 = arith.constant 11 : index
    %16 = memref.load %arg1[%c11] : memref<16xf32, #tpu.memory_space<smem>>
    %c12 = arith.constant 12 : index
    %17 = memref.load %arg1[%c12] : memref<16xf32, #tpu.memory_space<smem>>
    %c13 = arith.constant 13 : index
    %18 = memref.load %arg1[%c13] : memref<16xf32, #tpu.memory_space<smem>>
    %c14 = arith.constant 14 : index
    %19 = memref.load %arg1[%c14] : memref<16xf32, #tpu.memory_space<smem>>
    %c15 = arith.constant 15 : index
    %20 = memref.load %arg1[%c15] : memref<16xf32, #tpu.memory_space<smem>>
    %cst = arith.constant 0.000000e+00 : f32
    %21 = vector.broadcast %cst : f32 to vector<16x4xf32>
    %c0_i32 = arith.constant 0 : i32
    %22 = vector.broadcast %c0_i32 : i32 to vector<16x4xi32>
    %23 = arith.cmpi eq, %4, %22 : vector<16x4xi32>
    %24 = arith.extui %23 : vector<16x4xi1> to vector<16x4xi32>
    %25 = arith.sitofp %24 : vector<16x4xi32> to vector<16x4xf32>
    %26 = vector.broadcast %5 : f32 to vector<16x4xf32>
    %27 = arith.mulf %25, %26 : vector<16x4xf32>
    %28 = arith.addf %21, %27 : vector<16x4xf32>
    %c1_i32 = arith.constant 1 : i32
    %29 = vector.broadcast %c1_i32 : i32 to vector<16x4xi32>
    %30 = arith.cmpi eq, %4, %29 : vector<16x4xi32>
    %31 = arith.extui %30 : vector<16x4xi1> to vector<16x4xi32>
    %32 = arith.sitofp %31 : vector<16x4xi32> to vector<16x4xf32>
    %33 = vector.broadcast %6 : f32 to vector<16x4xf32>
    %34 = arith.mulf %32, %33 : vector<16x4xf32>
    %35 = arith.addf %28, %34 : vector<16x4xf32>
    %c2_i32 = arith.constant 2 : i32
    %36 = vector.broadcast %c2_i32 : i32 to vector<16x4xi32>
    %37 = arith.cmpi eq, %4, %36 : vector<16x4xi32>
    %38 = arith.extui %37 : vector<16x4xi1> to vector<16x4xi32>
    %39 = arith.sitofp %38 : vector<16x4xi32> to vector<16x4xf32>
    %40 = vector.broadcast %7 : f32 to vector<16x4xf32>
    %41 = arith.mulf %39, %40 : vector<16x4xf32>
    %42 = arith.addf %35, %41 : vector<16x4xf32>
    %c3_i32 = arith.constant 3 : i32
    %43 = vector.broadcast %c3_i32 : i32 to vector<16x4xi32>
    %44 = arith.cmpi eq, %4, %43 : vector<16x4xi32>
    %45 = arith.extui %44 : vector<16x4xi1> to vector<16x4xi32>
    %46 = arith.sitofp %45 : vector<16x4xi32> to vector<16x4xf32>
    %47 = vector.broadcast %8 : f32 to vector<16x4xf32>
    %48 = arith.mulf %46, %47 : vector<16x4xf32>
    %49 = arith.addf %42, %48 : vector<16x4xf32>
    %cst_0 = arith.constant 0.000000e+00 : f32
    %50 = vector.broadcast %cst_0 : f32 to vector<16x4xf32>
    %c0_i32_1 = arith.constant 0 : i32
    %51 = vector.broadcast %c0_i32_1 : i32 to vector<16x4xi32>
    %52 = arith.cmpi eq, %4, %51 : vector<16x4xi32>
    %53 = arith.extui %52 : vector<16x4xi1> to vector<16x4xi32>
    %54 = arith.sitofp %53 : vector<16x4xi32> to vector<16x4xf32>
    %55 = vector.broadcast %9 : f32 to vector<16x4xf32>
    %56 = arith.mulf %54, %55 : vector<16x4xf32>
    %57 = arith.addf %50, %56 : vector<16x4xf32>
    %c1_i32_2 = arith.constant 1 : i32
    %58 = vector.broadcast %c1_i32_2 : i32 to vector<16x4xi32>
    %59 = arith.cmpi eq, %4, %58 : vector<16x4xi32>
    %60 = arith.extui %59 : vector<16x4xi1> to vector<16x4xi32>
    %61 = arith.sitofp %60 : vector<16x4xi32> to vector<16x4xf32>
    %62 = vector.broadcast %10 : f32 to vector<16x4xf32>
    %63 = arith.mulf %61, %62 : vector<16x4xf32>
    %64 = arith.addf %57, %63 : vector<16x4xf32>
    %c2_i32_3 = arith.constant 2 : i32
    %65 = vector.broadcast %c2_i32_3 : i32 to vector<16x4xi32>
    %66 = arith.cmpi eq, %4, %65 : vector<16x4xi32>
    %67 = arith.extui %66 : vector<16x4xi1> to vector<16x4xi32>
    %68 = arith.sitofp %67 : vector<16x4xi32> to vector<16x4xf32>
    %69 = vector.broadcast %11 : f32 to vector<16x4xf32>
    %70 = arith.mulf %68, %69 : vector<16x4xf32>
    %71 = arith.addf %64, %70 : vector<16x4xf32>
    %c3_i32_4 = arith.constant 3 : i32
    %72 = vector.broadcast %c3_i32_4 : i32 to vector<16x4xi32>
    %73 = arith.cmpi eq, %4, %72 : vector<16x4xi32>
    %74 = arith.extui %73 : vector<16x4xi1> to vector<16x4xi32>
    %75 = arith.sitofp %74 : vector<16x4xi32> to vector<16x4xf32>
    %76 = vector.broadcast %12 : f32 to vector<16x4xf32>
    %77 = arith.mulf %75, %76 : vector<16x4xf32>
    %78 = arith.addf %71, %77 : vector<16x4xf32>
    %cst_5 = arith.constant 0.000000e+00 : f32
    %79 = vector.broadcast %cst_5 : f32 to vector<16x4xf32>
    %c0_i32_6 = arith.constant 0 : i32
    %80 = vector.broadcast %c0_i32_6 : i32 to vector<16x4xi32>
    %81 = arith.cmpi eq, %4, %80 : vector<16x4xi32>
    %82 = arith.extui %81 : vector<16x4xi1> to vector<16x4xi32>
    %83 = arith.sitofp %82 : vector<16x4xi32> to vector<16x4xf32>
    %84 = vector.broadcast %13 : f32 to vector<16x4xf32>
    %85 = arith.mulf %83, %84 : vector<16x4xf32>
    %86 = arith.addf %79, %85 : vector<16x4xf32>
    %c1_i32_7 = arith.constant 1 : i32
    %87 = vector.broadcast %c1_i32_7 : i32 to vector<16x4xi32>
    %88 = arith.cmpi eq, %4, %87 : vector<16x4xi32>
    %89 = arith.extui %88 : vector<16x4xi1> to vector<16x4xi32>
    %90 = arith.sitofp %89 : vector<16x4xi32> to vector<16x4xf32>
    %91 = vector.broadcast %14 : f32 to vector<16x4xf32>
    %92 = arith.mulf %90, %91 : vector<16x4xf32>
    %93 = arith.addf %86, %92 : vector<16x4xf32>
    %c2_i32_8 = arith.constant 2 : i32
    %94 = vector.broadcast %c2_i32_8 : i32 to vector<16x4xi32>
    %95 = arith.cmpi eq, %4, %94 : vector<16x4xi32>
    %96 = arith.extui %95 : vector<16x4xi1> to vector<16x4xi32>
    %97 = arith.sitofp %96 : vector<16x4xi32> to vector<16x4xf32>
    %98 = vector.broadcast %15 : f32 to vector<16x4xf32>
    %99 = arith.mulf %97, %98 : vector<16x4xf32>
    %100 = arith.addf %93, %99 : vector<16x4xf32>
    %c3_i32_9 = arith.constant 3 : i32
    %101 = vector.broadcast %c3_i32_9 : i32 to vector<16x4xi32>
    %102 = arith.cmpi eq, %4, %101 : vector<16x4xi32>
    %103 = arith.extui %102 : vector<16x4xi1> to vector<16x4xi32>
    %104 = arith.sitofp %103 : vector<16x4xi32> to vector<16x4xf32>
    %105 = vector.broadcast %16 : f32 to vector<16x4xf32>
    %106 = arith.mulf %104, %105 : vector<16x4xf32>
    %107 = arith.addf %100, %106 : vector<16x4xf32>
    %cst_10 = arith.constant 0.000000e+00 : f32
    %108 = vector.broadcast %cst_10 : f32 to vector<16x4xf32>
    %c0_i32_11 = arith.constant 0 : i32
    %109 = vector.broadcast %c0_i32_11 : i32 to vector<16x4xi32>
    %110 = arith.cmpi eq, %4, %109 : vector<16x4xi32>
    %111 = arith.extui %110 : vector<16x4xi1> to vector<16x4xi32>
    %112 = arith.sitofp %111 : vector<16x4xi32> to vector<16x4xf32>
    %113 = vector.broadcast %17 : f32 to vector<16x4xf32>
    %114 = arith.mulf %112, %113 : vector<16x4xf32>
    %115 = arith.addf %108, %114 : vector<16x4xf32>
    %c1_i32_12 = arith.constant 1 : i32
    %116 = vector.broadcast %c1_i32_12 : i32 to vector<16x4xi32>
    %117 = arith.cmpi eq, %4, %116 : vector<16x4xi32>
    %118 = arith.extui %117 : vector<16x4xi1> to vector<16x4xi32>
    %119 = arith.sitofp %118 : vector<16x4xi32> to vector<16x4xf32>
    %120 = vector.broadcast %18 : f32 to vector<16x4xf32>
    %121 = arith.mulf %119, %120 : vector<16x4xf32>
    %122 = arith.addf %115, %121 : vector<16x4xf32>
    %c2_i32_13 = arith.constant 2 : i32
    %123 = vector.broadcast %c2_i32_13 : i32 to vector<16x4xi32>
    %124 = arith.cmpi eq, %4, %123 : vector<16x4xi32>
    %125 = arith.extui %124 : vector<16x4xi1> to vector<16x4xi32>
    %126 = arith.sitofp %125 : vector<16x4xi32> to vector<16x4xf32>
    %127 = vector.broadcast %19 : f32 to vector<16x4xf32>
    %128 = arith.mulf %126, %127 : vector<16x4xf32>
    %129 = arith.addf %122, %128 : vector<16x4xf32>
    %c3_i32_14 = arith.constant 3 : i32
    %130 = vector.broadcast %c3_i32_14 : i32 to vector<16x4xi32>
    %131 = arith.cmpi eq, %4, %130 : vector<16x4xi32>
    %132 = arith.extui %131 : vector<16x4xi1> to vector<16x4xi32>
    %133 = arith.sitofp %132 : vector<16x4xi32> to vector<16x4xf32>
    %134 = vector.broadcast %20 : f32 to vector<16x4xf32>
    %135 = arith.mulf %133, %134 : vector<16x4xf32>
    %136 = arith.addf %129, %135 : vector<16x4xf32>
    %cst_15 = arith.constant 0.000000e+00 : f32
    %137 = vector.broadcast %cst_15 : f32 to vector<8x4xf32>
    %c0_16 = arith.constant 0 : index
    %c0_17 = arith.constant 0 : index
    %c0_18 = arith.constant 0 : index
    %138 = vector.load %arg2[%c0_16, %c0_17, %c0_18] : memref<8x16x16xf32, #tpu.memory_space<vmem>>, vector<8x1x16xf32>
    %139 = vector.shape_cast %138 : vector<8x1x16xf32> to vector<8x16xf32>
    %cst_19 = arith.constant dense<0.000000e+00> : vector<8x4xf32>
    %140 = tpu.matmul %139, %49, %cst_19 {dimension_numbers = #tpu.dot_dimension_numbers<[1], [0], [0], [1], [0, 0, 1, 1], [], []>} : vector<8x16xf32>, vector<16x4xf32>, vector<8x4xf32> -> vector<8x4xf32>
    %141 = arith.addf %137, %140 : vector<8x4xf32>
    %c0_20 = arith.constant 0 : index
    %c1_21 = arith.constant 1 : index
    %c0_22 = arith.constant 0 : index
    %142 = vector.load %arg2[%c0_20, %c1_21, %c0_22] : memref<8x16x16xf32, #tpu.memory_space<vmem>>, vector<8x1x16xf32>
    %143 = vector.shape_cast %142 : vector<8x1x16xf32> to vector<8x16xf32>
    %cst_23 = arith.constant dense<0.000000e+00> : vector<8x4xf32>
    %144 = tpu.matmul %143, %78, %cst_23 {dimension_numbers = #tpu.dot_dimension_numbers<[1], [0], [0], [1], [0, 0, 1, 1], [], []>} : vector<8x16xf32>, vector<16x4xf32>, vector<8x4xf32> -> vector<8x4xf32>
    %145 = arith.addf %141, %144 : vector<8x4xf32>
    %c0_24 = arith.constant 0 : index
    %c2_25 = arith.constant 2 : index
    %c0_26 = arith.constant 0 : index
    %146 = vector.load %arg2[%c0_24, %c2_25, %c0_26] : memref<8x16x16xf32, #tpu.memory_space<vmem>>, vector<8x1x16xf32>
    %147 = vector.shape_cast %146 : vector<8x1x16xf32> to vector<8x16xf32>
    %cst_27 = arith.constant dense<0.000000e+00> : vector<8x4xf32>
    %148 = tpu.matmul %147, %107, %cst_27 {dimension_numbers = #tpu.dot_dimension_numbers<[1], [0], [0], [1], [0, 0, 1, 1], [], []>} : vector<8x16xf32>, vector<16x4xf32>, vector<8x4xf32> -> vector<8x4xf32>
    %149 = arith.addf %145, %148 : vector<8x4xf32>
    %c0_28 = arith.constant 0 : index
    %c3_29 = arith.constant 3 : index
    %c0_30 = arith.constant 0 : index
    %150 = vector.load %arg2[%c0_28, %c3_29, %c0_30] : memref<8x16x16xf32, #tpu.memory_space<vmem>>, vector<8x1x16xf32>
    %151 = vector.shape_cast %150 : vector<8x1x16xf32> to vector<8x16xf32>
    %cst_31 = arith.constant dense<0.000000e+00> : vector<8x4xf32>
    %152 = tpu.matmul %151, %136, %cst_31 {dimension_numbers = #tpu.dot_dimension_numbers<[1], [0], [0], [1], [0, 0, 1, 1], [], []>} : vector<8x16xf32>, vector<16x4xf32>, vector<8x4xf32> -> vector<8x4xf32>
    %153 = arith.addf %149, %152 : vector<8x4xf32>
    %cst_32 = arith.constant 0.000000e+00 : f32
    %154 = vector.broadcast %cst_32 : f32 to vector<8x4xf32>
    %c0_33 = arith.constant 0 : index
    %c4_34 = arith.constant 4 : index
    %c0_35 = arith.constant 0 : index
    %155 = vector.load %arg2[%c0_33, %c4_34, %c0_35] : memref<8x16x16xf32, #tpu.memory_space<vmem>>, vector<8x1x16xf32>
    %156 = vector.shape_cast %155 : vector<8x1x16xf32> to vector<8x16xf32>
    %cst_36 = arith.constant dense<0.000000e+00> : vector<8x4xf32>
    %157 = tpu.matmul %156, %49, %cst_36 {dimension_numbers = #tpu.dot_dimension_numbers<[1], [0], [0], [1], [0, 0, 1, 1], [], []>} : vector<8x16xf32>, vector<16x4xf32>, vector<8x4xf32> -> vector<8x4xf32>
    %158 = arith.addf %154, %157 : vector<8x4xf32>
    %c0_37 = arith.constant 0 : index
    %c5_38 = arith.constant 5 : index
    %c0_39 = arith.constant 0 : index
    %159 = vector.load %arg2[%c0_37, %c5_38, %c0_39] : memref<8x16x16xf32, #tpu.memory_space<vmem>>, vector<8x1x16xf32>
    %160 = vector.shape_cast %159 : vector<8x1x16xf32> to vector<8x16xf32>
    %cst_40 = arith.constant dense<0.000000e+00> : vector<8x4xf32>
    %161 = tpu.matmul %160, %78, %cst_40 {dimension_numbers = #tpu.dot_dimension_numbers<[1], [0], [0], [1], [0, 0, 1, 1], [], []>} : vector<8x16xf32>, vector<16x4xf32>, vector<8x4xf32> -> vector<8x4xf32>
    %162 = arith.addf %158, %161 : vector<8x4xf32>
    %c0_41 = arith.constant 0 : index
    %c6_42 = arith.constant 6 : index
    %c0_43 = arith.constant 0 : index
    %163 = vector.load %arg2[%c0_41, %c6_42, %c0_43] : memref<8x16x16xf32, #tpu.memory_space<vmem>>, vector<8x1x16xf32>
    %164 = vector.shape_cast %163 : vector<8x1x16xf32> to vector<8x16xf32>
    %cst_44 = arith.constant dense<0.000000e+00> : vector<8x4xf32>
    %165 = tpu.matmul %164, %107, %cst_44 {dimension_numbers = #tpu.dot_dimension_numbers<[1], [0], [0], [1], [0, 0, 1, 1], [], []>} : vector<8x16xf32>, vector<16x4xf32>, vector<8x4xf32> -> vector<8x4xf32>
    %166 = arith.addf %162, %165 : vector<8x4xf32>
    %c0_45 = arith.constant 0 : index
    %c7_46 = arith.constant 7 : index
    %c0_47 = arith.constant 0 : index
    %167 = vector.load %arg2[%c0_45, %c7_46, %c0_47] : memref<8x16x16xf32, #tpu.memory_space<vmem>>, vector<8x1x16xf32>
    %168 = vector.shape_cast %167 : vector<8x1x16xf32> to vector<8x16xf32>
    %cst_48 = arith.constant dense<0.000000e+00> : vector<8x4xf32>
    %169 = tpu.matmul %168, %136, %cst_48 {dimension_numbers = #tpu.dot_dimension_numbers<[1], [0], [0], [1], [0, 0, 1, 1], [], []>} : vector<8x16xf32>, vector<16x4xf32>, vector<8x4xf32> -> vector<8x4xf32>
    %170 = arith.addf %166, %169 : vector<8x4xf32>
    %cst_49 = arith.constant 0.000000e+00 : f32
    %171 = vector.broadcast %cst_49 : f32 to vector<8x4xf32>
    %c0_50 = arith.constant 0 : index
    %c8_51 = arith.constant 8 : index
    %c0_52 = arith.constant 0 : index
    %172 = vector.load %arg2[%c0_50, %c8_51, %c0_52] : memref<8x16x16xf32, #tpu.memory_space<vmem>>, vector<8x1x16xf32>
    %173 = vector.shape_cast %172 : vector<8x1x16xf32> to vector<8x16xf32>
    %cst_53 = arith.constant dense<0.000000e+00> : vector<8x4xf32>
    %174 = tpu.matmul %173, %49, %cst_53 {dimension_numbers = #tpu.dot_dimension_numbers<[1], [0], [0], [1], [0, 0, 1, 1], [], []>} : vector<8x16xf32>, vector<16x4xf32>, vector<8x4xf32> -> vector<8x4xf32>
    %175 = arith.addf %171, %174 : vector<8x4xf32>
    %c0_54 = arith.constant 0 : index
    %c9_55 = arith.constant 9 : index
    %c0_56 = arith.constant 0 : index
    %176 = vector.load %arg2[%c0_54, %c9_55, %c0_56] : memref<8x16x16xf32, #tpu.memory_space<vmem>>, vector<8x1x16xf32>
    %177 = vector.shape_cast %176 : vector<8x1x16xf32> to vector<8x16xf32>
    %cst_57 = arith.constant dense<0.000000e+00> : vector<8x4xf32>
    %178 = tpu.matmul %177, %78, %cst_57 {dimension_numbers = #tpu.dot_dimension_numbers<[1], [0], [0], [1], [0, 0, 1, 1], [], []>} : vector<8x16xf32>, vector<16x4xf32>, vector<8x4xf32> -> vector<8x4xf32>
    %179 = arith.addf %175, %178 : vector<8x4xf32>
    %c0_58 = arith.constant 0 : index
    %c10_59 = arith.constant 10 : index
    %c0_60 = arith.constant 0 : index
    %180 = vector.load %arg2[%c0_58, %c10_59, %c0_60] : memref<8x16x16xf32, #tpu.memory_space<vmem>>, vector<8x1x16xf32>
    %181 = vector.shape_cast %180 : vector<8x1x16xf32> to vector<8x16xf32>
    %cst_61 = arith.constant dense<0.000000e+00> : vector<8x4xf32>
    %182 = tpu.matmul %181, %107, %cst_61 {dimension_numbers = #tpu.dot_dimension_numbers<[1], [0], [0], [1], [0, 0, 1, 1], [], []>} : vector<8x16xf32>, vector<16x4xf32>, vector<8x4xf32> -> vector<8x4xf32>
    %183 = arith.addf %179, %182 : vector<8x4xf32>
    %c0_62 = arith.constant 0 : index
    %c11_63 = arith.constant 11 : index
    %c0_64 = arith.constant 0 : index
    %184 = vector.load %arg2[%c0_62, %c11_63, %c0_64] : memref<8x16x16xf32, #tpu.memory_space<vmem>>, vector<8x1x16xf32>
    %185 = vector.shape_cast %184 : vector<8x1x16xf32> to vector<8x16xf32>
    %cst_65 = arith.constant dense<0.000000e+00> : vector<8x4xf32>
    %186 = tpu.matmul %185, %136, %cst_65 {dimension_numbers = #tpu.dot_dimension_numbers<[1], [0], [0], [1], [0, 0, 1, 1], [], []>} : vector<8x16xf32>, vector<16x4xf32>, vector<8x4xf32> -> vector<8x4xf32>
    %187 = arith.addf %183, %186 : vector<8x4xf32>
    %cst_66 = arith.constant 0.000000e+00 : f32
    %188 = vector.broadcast %cst_66 : f32 to vector<8x4xf32>
    %c0_67 = arith.constant 0 : index
    %c12_68 = arith.constant 12 : index
    %c0_69 = arith.constant 0 : index
    %189 = vector.load %arg2[%c0_67, %c12_68, %c0_69] : memref<8x16x16xf32, #tpu.memory_space<vmem>>, vector<8x1x16xf32>
    %190 = vector.shape_cast %189 : vector<8x1x16xf32> to vector<8x16xf32>
    %cst_70 = arith.constant dense<0.000000e+00> : vector<8x4xf32>
    %191 = tpu.matmul %190, %49, %cst_70 {dimension_numbers = #tpu.dot_dimension_numbers<[1], [0], [0], [1], [0, 0, 1, 1], [], []>} : vector<8x16xf32>, vector<16x4xf32>, vector<8x4xf32> -> vector<8x4xf32>
    %192 = arith.addf %188, %191 : vector<8x4xf32>
    %c0_71 = arith.constant 0 : index
    %c13_72 = arith.constant 13 : index
    %c0_73 = arith.constant 0 : index
    %193 = vector.load %arg2[%c0_71, %c13_72, %c0_73] : memref<8x16x16xf32, #tpu.memory_space<vmem>>, vector<8x1x16xf32>
    %194 = vector.shape_cast %193 : vector<8x1x16xf32> to vector<8x16xf32>
    %cst_74 = arith.constant dense<0.000000e+00> : vector<8x4xf32>
    %195 = tpu.matmul %194, %78, %cst_74 {dimension_numbers = #tpu.dot_dimension_numbers<[1], [0], [0], [1], [0, 0, 1, 1], [], []>} : vector<8x16xf32>, vector<16x4xf32>, vector<8x4xf32> -> vector<8x4xf32>
    %196 = arith.addf %192, %195 : vector<8x4xf32>
    %c0_75 = arith.constant 0 : index
    %c14_76 = arith.constant 14 : index
    %c0_77 = arith.constant 0 : index
    %197 = vector.load %arg2[%c0_75, %c14_76, %c0_77] : memref<8x16x16xf32, #tpu.memory_space<vmem>>, vector<8x1x16xf32>
    %198 = vector.shape_cast %197 : vector<8x1x16xf32> to vector<8x16xf32>
    %cst_78 = arith.constant dense<0.000000e+00> : vector<8x4xf32>
    %199 = tpu.matmul %198, %107, %cst_78 {dimension_numbers = #tpu.dot_dimension_numbers<[1], [0], [0], [1], [0, 0, 1, 1], [], []>} : vector<8x16xf32>, vector<16x4xf32>, vector<8x4xf32> -> vector<8x4xf32>
    %200 = arith.addf %196, %199 : vector<8x4xf32>
    %c0_79 = arith.constant 0 : index
    %c15_80 = arith.constant 15 : index
    %c0_81 = arith.constant 0 : index
    %201 = vector.load %arg2[%c0_79, %c15_80, %c0_81] : memref<8x16x16xf32, #tpu.memory_space<vmem>>, vector<8x1x16xf32>
    %202 = vector.shape_cast %201 : vector<8x1x16xf32> to vector<8x16xf32>
    %cst_82 = arith.constant dense<0.000000e+00> : vector<8x4xf32>
    %203 = tpu.matmul %202, %136, %cst_82 {dimension_numbers = #tpu.dot_dimension_numbers<[1], [0], [0], [1], [0, 0, 1, 1], [], []>} : vector<8x16xf32>, vector<16x4xf32>, vector<8x4xf32> -> vector<8x4xf32>
    %204 = arith.addf %200, %203 : vector<8x4xf32>
    %205 = tpu.concatenate %153, %170, %187, %204 in 1 : vector<8x4xf32>, vector<8x4xf32>, vector<8x4xf32>, vector<8x4xf32> -> vector<8x16xf32>
    %c0_83 = arith.constant 0 : index
    %c0_84 = arith.constant 0 : index
    %206 = vector.load %arg3[%c0_83, %c0_84] : memref<8x16xf32, #tpu.memory_space<vmem>>, vector<8x16xf32>
    tpu.vector_store %arg3[%c0_83, %c0_84], %205 {strides = array<i32>} : memref<8x16xf32, #tpu.memory_space<vmem>>, vector<8x16xf32>,
    return
  }
  func.func @transform_0(%arg0: i32) -> i32 {
    %c0_i32 = arith.constant 0 : i32
    %c0_i32_0 = arith.constant 0 : i32
    return %c0_i32 : i32
  }
  func.func @transform_1(%arg0: i32) -> (i32, i32, i32) {
    %c0_i32 = arith.constant 0 : i32
    %c0_i32_0 = arith.constant 0 : i32
    %c0_i32_1 = arith.constant 0 : i32
    return %arg0, %c0_i32, %c0_i32_0 : i32, i32, i32
  }
  func.func @transform_2(%arg0: i32) -> (i32, i32) {
    %c0_i32 = arith.constant 0 : i32
    %c0_i32_0 = arith.constant 0 : i32
    return %arg0, %c0_i32 : i32, i32
  }
}

</mosaic_0001>

<llo_original>
// kernel: tpu_custom_call.1
$region0: #{tpu_custom_call.1}
  #allocation0 [shape = 'u32[]', space=smem, size = 0x4, offset = 0x4, fixed_abs, tag = 'smem constant byte address 0x4 - core index']
  #allocation1 [shape = 'u32[144,128]{1,0:T(1,128)}', space=vmem, size = 0x12000, scoped, tag = 'internal scratch']
  %s0 = inlined_call_operand.hbm [shape: f32[16], index: 0, kind: input, shape index: {}]
  %s1 = inlined_call_operand.hbm [shape: f32[8,16,16], index: 1, kind: input, shape index: {}]
  %s2 = inlined_call_operand.hbm [shape: f32[8,16], index: 2, kind: output, shape index: {}]
  %s3 = sld [smem:[#allocation0]]
  $region26: #{tpu_custom_call.1} parent=0
    _
  %s5 = ssub.s32 1, %s3
  %s6 = scalar_select 0, %s5, %s3
  $region1: #{tpu_custom_call.1} parent=0
    #allocation2 [shape = 'u8[512]{0}', space=smem, size = 0x200, scoped, tag = 'input window, operand 0, single buffered']
    #allocation3 [shape = 's32[1]{0}', space=sflag, size = 0x4, scoped, tag = 'scoped memory for tpu_custom_call.1']
    #allocation4 [shape = 's32[1]{0}', space=sflag, size = 0x4, scoped, tag = 'scoped memory for tpu_custom_call.1']
    #allocation5 [shape = 's32[1]{0}', space=sflag, size = 0x4, scoped, tag = 'scoped memory for tpu_custom_call.1']
    #allocation6 [shape = 'u8[65536]{0}', space=vmem, size = 0x10000, scoped, tag = 'input window, operand 1, single buffered']
    #allocation7 [shape = 'u8[4096]{0}', space=vmem, size = 0x1000, scoped, tag = 'output window, operand 0, single buffered']
    %7 = vsyncpa [#allocation5], 0
    %8 = vsyncpa [#allocation3], 0
    %9 = vsyncpa [#allocation4], 0
    // Predicated region
    $region2: #{tpu_custom_call.1} parent=1 // pred_check
      _
    $region3: #{tpu_custom_call.1} parent=1 // pred_check_branch
      %11 = sbr.rel (0) target = $region5
    $region4: #{tpu_custom_call.1} parent=1 // pred_region
      %s13 = ssub.s32 16, 16
      %14 = vsyncadd [#allocation5], %s13
      %17 = dma.hbm_to_smem %s0, 16, [#allocation2], [#allocation5]
    $region5: #{tpu_custom_call.1} parent=1 // pred_fallthru
      _
    // Predicated region
    $region6: #{tpu_custom_call.1} parent=1 // pred_check
      _
    $region7: #{tpu_custom_call.1} parent=1 // pred_check_branch
      %19 = sbr.rel (0) target = $region9
    $region8: #{tpu_custom_call.1} parent=1 // pred_region
      %s21 = ssub.s32 2048, 2048
      %22 = vsyncadd [#allocation3], %s21
      %s23 = sshll.u32 [#allocation6], 4
      %s24 = int_to_ptr.vmem [resolvable:$true] %s23
      %29 = dma.hbm_to_vmem [thread:$0]  %s1, 2048, %s24, [#allocation3], 128, 128, 8
    $region9: #{tpu_custom_call.1} parent=1 // pred_fallthru
      _
    // Predicated region
    $region10: #{tpu_custom_call.1} parent=1 // pred_check
      _
    $region11: #{tpu_custom_call.1} parent=1 // pred_check_branch
      %31 = sbr.rel (0) target = $region13
    $region12: #{tpu_custom_call.1} parent=1 // pred_region
      %32 = dma.done [#allocation5], 16
    $region13: #{tpu_custom_call.1} parent=1 // pred_fallthru
      _
    // Predicated region
    $region14: #{tpu_custom_call.1} parent=1 // pred_check
      _
    $region15: #{tpu_custom_call.1} parent=1 // pred_check_branch
      %34 = sbr.rel (0) target = $region17
    $region16: #{tpu_custom_call.1} parent=1 // pred_region
      %35 = dma.done [#allocation3], 2048
    $region17: #{tpu_custom_call.1} parent=1 // pred_fallthru
      _
    %36 = sfence
    %v37 = vlaneseq
    %v38 = vshrl.u32 %v37, 7
    %v39 = vadd.s32 %v38, 8
    %v40 = vlaneseq
    %v41 = vand.u32 %v40, 127
    %v42 = vmul.u32 %v41, 4
    %v43 = vsub.s32 %v38, %v42
    %v44 = vsub.s32 %v39, %v42
    %s45 = sld [smem:[#allocation2]]
    %s46 = sld [smem:[#allocation2 + $0x1]]
    %s47 = sld [smem:[#allocation2 + $0x2]]
    %s48 = sld [smem:[#allocation2 + $0x3]]
    %s49 = sld [smem:[#allocation2 + $0x4]]
    %s50 = sld [smem:[#allocation2 + $0x5]]
    %s51 = sld [smem:[#allocation2 + $0x6]]
    %s52 = sld [smem:[#allocation2 + $0x7]]
    %s53 = sld [smem:[#allocation2 + $0x8]]
    %s54 = sld [smem:[#allocation2 + $0x9]]
    %s55 = sld [smem:[#allocation2 + $0xa]]
    %s56 = sld [smem:[#allocation2 + $0xb]]
    %s57 = sld [smem:[#allocation2 + $0xc]]
    %s58 = sld [smem:[#allocation2 + $0xd]]
    %s59 = sld [smem:[#allocation2 + $0xe]]
    %s60 = sld [smem:[#allocation2 + $0xf]]
    %vm61 = vcmp.eq.s32.totalorder %v43, 0
    %vm62 = vcmp.eq.s32.totalorder %v44, 0
    %v63 = vsel %vm61, 1, 0
    %v64 = vsel %vm62, 1, 0
    %v65 = vcvt.s32.f32 %v63
    %v66 = vcvt.s32.f32 %v64
    %v67 = vstv %s45
    %v68 = vmul.f32 %v65, %v67
    %v69 = vmul.f32 %v66, %v67
    %v70 = vadd.f32 %v68, 0.0
    %v71 = vadd.f32 %v69, 0.0
    %vm72 = vcmp.eq.s32.totalorder %v43, 1
    %vm73 = vcmp.eq.s32.totalorder %v44, 1
    %v74 = vsel %vm72, 1, 0
    %v75 = vsel %vm73, 1, 0
    %v76 = vcvt.s32.f32 %v74
    %v77 = vcvt.s32.f32 %v75
    %v78 = vstv %s46
    %v79 = vmul.f32 %v76, %v78
    %v80 = vmul.f32 %v77, %v78
    %v81 = vadd.f32 %v70, %v79
    %v82 = vadd.f32 %v71, %v80
    %vm83 = vcmp.eq.s32.totalorder %v43, 2
    %vm84 = vcmp.eq.s32.totalorder %v44, 2
    %v85 = vsel %vm83, 1, 0
    %v86 = vsel %vm84, 1, 0
    %v87 = vcvt.s32.f32 %v85
    %v88 = vcvt.s32.f32 %v86
    %v89 = vstv %s47
    %v90 = vmul.f32 %v87, %v89
    %v91 = vmul.f32 %v88, %v89
    %v92 = vadd.f32 %v81, %v90
    %v93 = vadd.f32 %v82, %v91
    %vm94 = vcmp.eq.s32.totalorder %v43, 3
    %vm95 = vcmp.eq.s32.totalorder %v44, 3
    %v96 = vsel %vm94, 1, 0
    %v97 = vsel %vm95, 1, 0
    %v98 = vcvt.s32.f32 %v96
    %v99 = vcvt.s32.f32 %v97
    %v100 = vstv %s48
    %v101 = vmul.f32 %v98, %v100
    %v102 = vmul.f32 %v99, %v100
    %v103 = vadd.f32 %v92, %v101
    %v104 = vadd.f32 %v93, %v102
    %v105 = vstv %s49
    %v106 = vmul.f32 %v65, %v105
    %v107 = vmul.f32 %v66, %v105
    %v108 = vadd.f32 %v106, 0.0
    %v109 = vadd.f32 %v107, 0.0
    %v110 = vstv %s50
    %v111 = vmul.f32 %v76, %v110
    %v112 = vmul.f32 %v77, %v110
    %v113 = vadd.f32 %v108, %v111
    %v114 = vadd.f32 %v109, %v112
    %v115 = vstv %s51
    %v116 = vmul.f32 %v87, %v115
    %v117 = vmul.f32 %v88, %v115
    %v118 = vadd.f32 %v113, %v116
    %v119 = vadd.f32 %v114, %v117
    %v120 = vstv %s52
    %v121 = vmul.f32 %v98, %v120
    %v122 = vmul.f32 %v99, %v120
    %v123 = vadd.f32 %v118, %v121
    %v124 = vadd.f32 %v119, %v122
    %v125 = vstv %s53
    %v126 = vmul.f32 %v65, %v125
    %v127 = vmul.f32 %v66, %v125
    %v128 = vadd.f32 %v126, 0.0
    %v129 = vadd.f32 %v127, 0.0
    %v130 = vstv %s54
    %v131 = vmul.f32 %v76, %v130
    %v132 = vmul.f32 %v77, %v130
    %v133 = vadd.f32 %v128, %v131
    %v134 = vadd.f32 %v129, %v132
    %v135 = vstv %s55
    %v136 = vmul.f32 %v87, %v135
    %v137 = vmul.f32 %v88, %v135
    %v138 = vadd.f32 %v133, %v136
    %v139 = vadd.f32 %v134, %v137
    %v140 = vstv %s56
    %v141 = vmul.f32 %v98, %v140
    %v142 = vmul.f32 %v99, %v140
    %v143 = vadd.f32 %v138, %v141
    %v144 = vadd.f32 %v139, %v142
    %v145 = vstv %s57
    %v146 = vmul.f32 %v65, %v145
    %v147 = vmul.f32 %v66, %v145
    %v148 = vadd.f32 %v146, 0.0
    %v149 = vadd.f32 %v147, 0.0
    %v150 = vstv %s58
    %v151 = vmul.f32 %v76, %v150
    %v152 = vmul.f32 %v77, %v150
    %v153 = vadd.f32 %v148, %v151
    %v154 = vadd.f32 %v149, %v152
    %v155 = vstv %s59
    %v156 = vmul.f32 %v87, %v155
    %v157 = vmul.f32 %v88, %v155
    %v158 = vadd.f32 %v153, %v156
    %v159 = vadd.f32 %v154, %v157
    %v160 = vstv %s60
    %v161 = vmul.f32 %v98, %v160
    %v162 = vmul.f32 %v99, %v160
    %v163 = vadd.f32 %v158, %v161
    %v164 = vadd.f32 %v159, %v162
    %v165 = vld [vmem:[#allocation6] sm:$0x1]
    %v166 = vld [vmem:[#allocation6 + $0x10] sm:$0x1]
    %v167 = vld [vmem:[#allocation6 + $0x20] sm:$0x1]
    %v168 = vld [vmem:[#allocation6 + $0x30] sm:$0x1]
    %v169 = vld [vmem:[#allocation6 + $0x40] sm:$0x1]
    %v170 = vld [vmem:[#allocation6 + $0x50] sm:$0x1]
    %v171 = vld [vmem:[#allocation6 + $0x60] sm:$0x1]
    %v172 = vld [vmem:[#allocation6 + $0x70] sm:$0x1]
    %v173 = vld [vmem:[#allocation6 + $0x1] sm:$0x1]
    %v174 = vld [vmem:[#allocation6 + $0x11] sm:$0x1]
    %v175 = vld [vmem:[#allocation6 + $0x21] sm:$0x1]
    %v176 = vld [vmem:[#allocation6 + $0x31] sm:$0x1]
    %v177 = vld [vmem:[#allocation6 + $0x41] sm:$0x1]
    %v178 = vld [vmem:[#allocation6 + $0x51] sm:$0x1]
    %v179 = vld [vmem:[#allocation6 + $0x61] sm:$0x1]
    %v180 = vld [vmem:[#allocation6 + $0x71] sm:$0x1]
    %v189 = vrot.slane %v174, 7
    %vm190 = vcmask 1041409
    %v191 = vsel %vm190, %v189, %v173
    %v192 = vrot.slane %v175, 6
    %vm193 = vcmask 1042434
    %v194 = vsel %vm193, %v192, %v191
    %v195 = vrot.slane %v176, 5
    %vm196 = vcmask 1043459
    %v197 = vsel %vm196, %v195, %v194
    %v198 = vrot.slane %v177, 4
    %vm199 = vcmask 1044484
    %v200 = vsel %vm199, %v198, %v197
    %v201 = vrot.slane %v178, 3
    %vm202 = vcmask 1045509
    %v203 = vsel %vm202, %v201, %v200
    %v204 = vrot.slane %v179, 2
    %vm205 = vcmask 1046534
    %v206 = vsel %vm205, %v204, %v203
    %v207 = vrot.slane %v180, 1
    %vm208 = vcmask 1047559
    %v209 = vsel %vm208, %v207, %v206
    %vm210 = vcmask 130048
    %v211 = vsel %vm210, %v209, 0
    %213 = vmatprep.subr.mxu0 0.0
    %214 = vmatpush1.msra.mxu0 %v123
    %215 = vmatprep.subr.mxu0 0.0
    %216 = vmatpush1.msra.mxu0 %v124
    %217 = vmatprep.subr.mxu0 0.0
    %218 = vmatpush1.msra.mxu0 0.0
    %219 = vmatprep.subr.mxu0 0.0
    %220 = vmatpush1.msra.mxu0 0.0
    %221 = vmatprep.subr.mxu0 0.0
    %222 = vmatpush1.msra.mxu0 0.0
    %223 = vmatprep.subr.mxu0 0.0
    %224 = vmatpush1.msra.mxu0 0.0
    %225 = vmatprep.subr.mxu0 0.0
    %226 = vmatpush1.msra.mxu0 0.0
    %227 = vmatprep.subr.mxu0 0.0
    %228 = vmatpush1.msra.mxu0 0.0
    %229 = vmatprep.subr.mxu0 0.0
    %230 = vmatpush1.msra.mxu0 0.0
    %231 = vmatprep.subr.mxu0 0.0
    %232 = vmatpush1.msra.mxu0 0.0
    %233 = vmatprep.subr.mxu0 0.0
    %234 = vmatpush1.msra.mxu0 0.0
    %235 = vmatprep.subr.mxu0 0.0
    %236 = vmatpush1.msra.mxu0 0.0
    %237 = vmatprep.subr.mxu0 0.0
    %238 = vmatpush1.msra.mxu0 0.0
    %239 = vmatprep.subr.mxu0 0.0
    %240 = vmatpush1.msra.mxu0 0.0
    %241 = vmatprep.subr.mxu0 0.0
    %242 = vmatpush1.msra.mxu0 0.0
    %243 = vmatprep.subr.mxu0 0.0
    %244 = vmatpush1.msra.mxu0 0.0
    %245 = vmatprep.subr.mxu0 0.0
    %246 = vmatpush1.msra.mxu0 0.0
    %247 = vmatprep.subr.mxu0 0.0
    %248 = vmatpush1.msra.mxu0 0.0
    %249 = vmatprep.subr.mxu0 0.0
    %250 = vmatpush1.msra.mxu0 0.0
    %251 = vmatprep.subr.mxu0 0.0
    %252 = vmatpush1.msra.mxu0 0.0
    %253 = vmatprep.subr.mxu0 0.0
    %254 = vmatpush1.msra.mxu0 0.0
    %255 = vmatprep.subr.mxu0 0.0
    %256 = vmatpush1.msra.mxu0 0.0
    %257 = vmatprep.subr.mxu0 0.0
    %258 = vmatpush1.msra.mxu0 0.0
    %259 = vmatprep.subr.mxu0 0.0
    %260 = vmatpush1.msra.mxu0 0.0
    %261 = vmatprep.subr.mxu0 0.0
    %262 = vmatpush1.msra.mxu0 0.0
    %263 = vmatprep.subr.mxu0 0.0
    %264 = vmatpush1.msra.mxu0 0.0
    %265 = vmatprep.subr.mxu0 0.0
    %266 = vmatpush1.msra.mxu0 0.0
    %267 = vmatprep.subr.mxu0 0.0
    %268 = vmatpush1.msra.mxu0 0.0
    %269 = vmatprep.subr.mxu0 0.0
    %270 = vmatpush1.msra.mxu0 0.0
    %271 = vmatprep.subr.mxu0 0.0
    %272 = vmatpush1.msra.mxu0 0.0
    %273 = vmatprep.subr.mxu0 0.0
    %274 = vmatpush1.msra.mxu0 0.0
    %275 = vmatprep.subr.mxu0 0.0
    %276 = vmatpush1.msra.mxu0 0.0
    %277 = vmatprep.mubr.f32.mxu0 0.0
    %278 = vmatmul.mubr.f32.gmra.mrb[0].mxu0 %v211
    %v279 = vpop.f32.mrb[0].mxu0
    %v280 = vadd.f32 0.0, %v279
    %v281 = vpop.f32.mrb[0].mxu0
    %282 = vdwg.mxu0
    %v291 = vrot.slane %v166, 7
    %v292 = vsel %vm190, %v291, %v165
    %v293 = vrot.slane %v167, 6
    %v294 = vsel %vm193, %v293, %v292
    %v295 = vrot.slane %v168, 5
    %v296 = vsel %vm196, %v295, %v294
    %v297 = vrot.slane %v169, 4
    %v298 = vsel %vm199, %v297, %v296
    %v299 = vrot.slane %v170, 3
    %v300 = vsel %vm202, %v299, %v298
    %v301 = vrot.slane %v171, 2
    %v302 = vsel %vm205, %v301, %v300
    %v303 = vrot.slane %v172, 1
    %v304 = vsel %vm208, %v303, %v302
    %v305 = vsel %vm210, %v304, 0
    %307 = vmatprep.subr.mxu0 0.0
    %308 = vmatpush1.msra.mxu0 %v103
    %309 = vmatprep.subr.mxu0 0.0
    %310 = vmatpush1.msra.mxu0 %v104
    %311 = vmatprep.subr.mxu0 0.0
    %312 = vmatpush1.msra.mxu0 0.0
    %313 = vmatprep.subr.mxu0 0.0
    %314 = vmatpush1.msra.mxu0 0.0
    %315 = vmatprep.subr.mxu0 0.0
    %316 = vmatpush1.msra.mxu0 0.0
    %317 = vmatprep.subr.mxu0 0.0
    %318 = vmatpush1.msra.mxu0 0.0
    %319 = vmatprep.subr.mxu0 0.0
    %320 = vmatpush1.msra.mxu0 0.0
    %321 = vmatprep.subr.mxu0 0.0
    %322 = vmatpush1.msra.mxu0 0.0
    %323 = vmatprep.subr.mxu0 0.0
    %324 = vmatpush1.msra.mxu0 0.0
    %325 = vmatprep.subr.mxu0 0.0
    %326 = vmatpush1.msra.mxu0 0.0
    %327 = vmatprep.subr.mxu0 0.0
    %328 = vmatpush1.msra.mxu0 0.0
    %329 = vmatprep.subr.mxu0 0.0
    %330 = vmatpush1.msra.mxu0 0.0
    %331 = vmatprep.subr.mxu0 0.0
    %332 = vmatpush1.msra.mxu0 0.0
    %333 = vmatprep.subr.mxu0 0.0
    %334 = vmatpush1.msra.mxu0 0.0
    %335 = vmatprep.subr.mxu0 0.0
    %336 = vmatpush1.msra.mxu0 0.0
    %337 = vmatprep.subr.mxu0 0.0
    %338 = vmatpush1.msra.mxu0 0.0
    %339 = vmatprep.subr.mxu0 0.0
    %340 = vmatpush1.msra.mxu0 0.0
    %341 = vmatprep.subr.mxu0 0.0
    %342 = vmatpush1.msra.mxu0 0.0
    %343 = vmatprep.subr.mxu0 0.0
    %344 = vmatpush1.msra.mxu0 0.0
    %345 = vmatprep.subr.mxu0 0.0
    %346 = vmatpush1.msra.mxu0 0.0
    %347 = vmatprep.subr.mxu0 0.0
    %348 = vmatpush1.msra.mxu0 0.0
    %349 = vmatprep.subr.mxu0 0.0
    %350 = vmatpush1.msra.mxu0 0.0
    %351 = vmatprep.subr.mxu0 0.0
    %352 = vmatpush1.msra.mxu0 0.0
    %353 = vmatprep.subr.mxu0 0.0
    %354 = vmatpush1.msra.mxu0 0.0
    %355 = vmatprep.subr.mxu0 0.0
    %356 = vmatpush1.msra.mxu0 0.0
    %357 = vmatprep.subr.mxu0 0.0
    %358 = vmatpush1.msra.mxu0 0.0
    %359 = vmatprep.subr.mxu0 0.0
    %360 = vmatpush1.msra.mxu0 0.0
    %361 = vmatprep.subr.mxu0 0.0
    %362 = vmatpush1.msra.mxu0 0.0
    %363 = vmatprep.subr.mxu0 0.0
    %364 = vmatpush1.msra.mxu0 0.0
    %365 = vmatprep.subr.mxu0 0.0
    %366 = vmatpush1.msra.mxu0 0.0
    %367 = vmatprep.subr.mxu0 0.0
    %368 = vmatpush1.msra.mxu0 0.0
    %369 = vmatprep.subr.mxu0 0.0
    %370 = vmatpush1.msra.mxu0 0.0
    %371 = vmatprep.mubr.f32.mxu0 0.0
    %372 = vmatmul.mubr.f32.gmra.mrb[0].mxu0 %v305
    %v373 = vpop.f32.mrb[0].mxu0
    %v374 = vadd.f32 %v280, %v373
    %v375 = vpop.f32.mrb[0].mxu0
    %376 = vdwg.mxu0
    %v377 = vld [vmem:[#allocation6 + $0x2] sm:$0x1]
    %v378 = vld [vmem:[#allocation6 + $0x12] sm:$0x1]
    %v379 = vld [vmem:[#allocation6 + $0x22] sm:$0x1]
    %v380 = vld [vmem:[#allocation6 + $0x32] sm:$0x1]
    %v381 = vld [vmem:[#allocation6 + $0x42] sm:$0x1]
    %v382 = vld [vmem:[#allocation6 + $0x52] sm:$0x1]
    %v383 = vld [vmem:[#allocation6 + $0x62] sm:$0x1]
    %v384 = vld [vmem:[#allocation6 + $0x72] sm:$0x1]
    %v393 = vrot.slane %v378, 7
    %v394 = vsel %vm190, %v393, %v377
    %v395 = vrot.slane %v379, 6
    %v396 = vsel %vm193, %v395, %v394
    %v397 = vrot.slane %v380, 5
    %v398 = vsel %vm196, %v397, %v396
    %v399 = vrot.slane %v381, 4
    %v400 = vsel %vm199, %v399, %v398
    %v401 = vrot.slane %v382, 3
    %v402 = vsel %vm202, %v401, %v400
    %v403 = vrot.slane %v383, 2
    %v404 = vsel %vm205, %v403, %v402
    %v405 = vrot.slane %v384, 1
    %v406 = vsel %vm208, %v405, %v404
    %v407 = vsel %vm210, %v406, 0
    %409 = vmatprep.subr.mxu0 0.0
    %410 = vmatpush1.msra.mxu0 %v143
    %411 = vmatprep.subr.mxu0 0.0
    %412 = vmatpush1.msra.mxu0 %v144
    %413 = vmatprep.subr.mxu0 0.0
    %414 = vmatpush1.msra.mxu0 0.0
    %415 = vmatprep.subr.mxu0 0.0
    %416 = vmatpush1.msra.mxu0 0.0
    %417 = vmatprep.subr.mxu0 0.0
    %418 = vmatpush1.msra.mxu0 0.0
    %419 = vmatprep.subr.mxu0 0.0
    %420 = vmatpush1.msra.mxu0 0.0
    %421 = vmatprep.subr.mxu0 0.0
    %422 = vmatpush1.msra.mxu0 0.0
    %423 = vmatprep.subr.mxu0 0.0
    %424 = vmatpush1.msra.mxu0 0.0
    %425 = vmatprep.subr.mxu0 0.0
    %426 = vmatpush1.msra.mxu0 0.0
    %427 = vmatprep.subr.mxu0 0.0
    %428 = vmatpush1.msra.mxu0 0.0
    %429 = vmatprep.subr.mxu0 0.0
    %430 = vmatpush1.msra.mxu0 0.0
    %431 = vmatprep.subr.mxu0 0.0
    %432 = vmatpush1.msra.mxu0 0.0
    %433 = vmatprep.subr.mxu0 0.0
    %434 = vmatpush1.msra.mxu0 0.0
    %435 = vmatprep.subr.mxu0 0.0
    %436 = vmatpush1.msra.mxu0 0.0
    %437 = vmatprep.subr.mxu0 0.0
    %438 = vmatpush1.msra.mxu0 0.0
    %439 = vmatprep.subr.mxu0 0.0
    %440 = vmatpush1.msra.mxu0 0.0
    %441 = vmatprep.subr.mxu0 0.0
    %442 = vmatpush1.msra.mxu0 0.0
    %443 = vmatprep.subr.mxu0 0.0
    %444 = vmatpush1.msra.mxu0 0.0
    %445 = vmatprep.subr.mxu0 0.0
    %446 = vmatpush1.msra.mxu0 0.0
    %447 = vmatprep.subr.mxu0 0.0
    %448 = vmatpush1.msra.mxu0 0.0
    %449 = vmatprep.subr.mxu0 0.0
    %450 = vmatpush1.msra.mxu0 0.0
    %451 = vmatprep.subr.mxu0 0.0
    %452 = vmatpush1.msra.mxu0 0.0
    %453 = vmatprep.subr.mxu0 0.0
    %454 = vmatpush1.msra.mxu0 0.0
    %455 = vmatprep.subr.mxu0 0.0
    %456 = vmatpush1.msra.mxu0 0.0
    %457 = vmatprep.subr.mxu0 0.0
    %458 = vmatpush1.msra.mxu0 0.0
    %459 = vmatprep.subr.mxu0 0.0
    %460 = vmatpush1.msra.mxu0 0.0
    %461 = vmatprep.subr.mxu0 0.0
    %462 = vmatpush1.msra.mxu0 0.0
    %463 = vmatprep.subr.mxu0 0.0
    %464 = vmatpush1.msra.mxu0 0.0
    %465 = vmatprep.subr.mxu0 0.0
    %466 = vmatpush1.msra.mxu0 0.0
    %467 = vmatprep.subr.mxu0 0.0
    %468 = vmatpush1.msra.mxu0 0.0
    %469 = vmatprep.subr.mxu0 0.0
    %470 = vmatpush1.msra.mxu0 0.0
    %471 = vmatprep.subr.mxu0 0.0
    %472 = vmatpush1.msra.mxu0 0.0
    %473 = vmatprep.mubr.f32.mxu0 0.0
    %474 = vmatmul.mubr.f32.gmra.mrb[0].mxu0 %v407
    %v475 = vpop.f32.mrb[0].mxu0
    %v476 = vadd.f32 0.0, %v475
    %v477 = vpop.f32.mrb[0].mxu0
    %478 = vdwg.mxu0
    %v479 = vadd.f32 %v374, %v476
    %v480 = vld [vmem:[#allocation6 + $0x3] sm:$0x1]
    %v481 = vld [vmem:[#allocation6 + $0x13] sm:$0x1]
    %v482 = vld [vmem:[#allocation6 + $0x23] sm:$0x1]
    %v483 = vld [vmem:[#allocation6 + $0x33] sm:$0x1]
    %v484 = vld [vmem:[#allocation6 + $0x43] sm:$0x1]
    %v485 = vld [vmem:[#allocation6 + $0x53] sm:$0x1]
    %v486 = vld [vmem:[#allocation6 + $0x63] sm:$0x1]
    %v487 = vld [vmem:[#allocation6 + $0x73] sm:$0x1]
    %v496 = vrot.slane %v481, 7
    %v497 = vsel %vm190, %v496, %v480
    %v498 = vrot.slane %v482, 6
    %v499 = vsel %vm193, %v498, %v497
    %v500 = vrot.slane %v483, 5
    %v501 = vsel %vm196, %v500, %v499
    %v502 = vrot.slane %v484, 4
    %v503 = vsel %vm199, %v502, %v501
    %v504 = vrot.slane %v485, 3
    %v505 = vsel %vm202, %v504, %v503
    %v506 = vrot.slane %v486, 2
    %v507 = vsel %vm205, %v506, %v505
    %v508 = vrot.slane %v487, 1
    %v509 = vsel %vm208, %v508, %v507
    %v510 = vsel %vm210, %v509, 0
    %512 = vmatprep.subr.mxu0 0.0
    %513 = vmatpush1.msra.mxu0 %v163
    %514 = vmatprep.subr.mxu0 0.0
    %515 = vmatpush1.msra.mxu0 %v164
    %516 = vmatprep.subr.mxu0 0.0
    %517 = vmatpush1.msra.mxu0 0.0
    %518 = vmatprep.subr.mxu0 0.0
    %519 = vmatpush1.msra.mxu0 0.0
    %520 = vmatprep.subr.mxu0 0.0
    %521 = vmatpush1.msra.mxu0 0.0
    %522 = vmatprep.subr.mxu0 0.0
    %523 = vmatpush1.msra.mxu0 0.0
    %524 = vmatprep.subr.mxu0 0.0
    %525 = vmatpush1.msra.mxu0 0.0
    %526 = vmatprep.subr.mxu0 0.0
    %527 = vmatpush1.msra.mxu0 0.0
    %528 = vmatprep.subr.mxu0 0.0
    %529 = vmatpush1.msra.mxu0 0.0
    %530 = vmatprep.subr.mxu0 0.0
    %531 = vmatpush1.msra.mxu0 0.0
    %532 = vmatprep.subr.mxu0 0.0
    %533 = vmatpush1.msra.mxu0 0.0
    %534 = vmatprep.subr.mxu0 0.0
    %535 = vmatpush1.msra.mxu0 0.0
    %536 = vmatprep.subr.mxu0 0.0
    %537 = vmatpush1.msra.mxu0 0.0
    %538 = vmatprep.subr.mxu0 0.0
    %539 = vmatpush1.msra.mxu0 0.0
    %540 = vmatprep.subr.mxu0 0.0
    %541 = vmatpush1.msra.mxu0 0.0
    %542 = vmatprep.subr.mxu0 0.0
    %543 = vmatpush1.msra.mxu0 0.0
    %544 = vmatprep.subr.mxu0 0.0
    %545 = vmatpush1.msra.mxu0 0.0
    %546 = vmatprep.subr.mxu0 0.0
    %547 = vmatpush1.msra.mxu0 0.0
    %548 = vmatprep.subr.mxu0 0.0
    %549 = vmatpush1.msra.mxu0 0.0
    %550 = vmatprep.subr.mxu0 0.0
    %551 = vmatpush1.msra.mxu0 0.0
    %552 = vmatprep.subr.mxu0 0.0
    %553 = vmatpush1.msra.mxu0 0.0
    %554 = vmatprep.subr.mxu0 0.0
    %555 = vmatpush1.msra.mxu0 0.0
    %556 = vmatprep.subr.mxu0 0.0
    %557 = vmatpush1.msra.mxu0 0.0
    %558 = vmatprep.subr.mxu0 0.0
    %559 = vmatpush1.msra.mxu0 0.0
    %560 = vmatprep.subr.mxu0 0.0
    %561 = vmatpush1.msra.mxu0 0.0
    %562 = vmatprep.subr.mxu0 0.0
    %563 = vmatpush1.msra.mxu0 0.0
    %564 = vmatprep.subr.mxu0 0.0
    %565 = vmatpush1.msra.mxu0 0.0
    %566 = vmatprep.subr.mxu0 0.0
    %567 = vmatpush1.msra.mxu0 0.0
    %568 = vmatprep.subr.mxu0 0.0
    %569 = vmatpush1.msra.mxu0 0.0
    %570 = vmatprep.subr.mxu0 0.0
    %571 = vmatpush1.msra.mxu0 0.0
    %572 = vmatprep.subr.mxu0 0.0
    %573 = vmatpush1.msra.mxu0 0.0
    %574 = vmatprep.subr.mxu0 0.0
    %575 = vmatpush1.msra.mxu0 0.0
    %576 = vmatprep.mubr.f32.mxu0 0.0
    %577 = vmatmul.mubr.f32.gmra.mrb[0].mxu0 %v510
    %v578 = vpop.f32.mrb[0].mxu0
    %v579 = vadd.f32 0.0, %v578
    %v580 = vpop.f32.mrb[0].mxu0
    %581 = vdwg.mxu0
    %v582 = vadd.f32 %v479, %v579
    %v583 = vld [vmem:[#allocation6 + $0x4] sm:$0x1]
    %v584 = vld [vmem:[#allocation6 + $0x14] sm:$0x1]
    %v585 = vld [vmem:[#allocation6 + $0x24] sm:$0x1]
    %v586 = vld [vmem:[#allocation6 + $0x34] sm:$0x1]
    %v587 = vld [vmem:[#allocation6 + $0x44] sm:$0x1]
    %v588 = vld [vmem:[#allocation6 + $0x54] sm:$0x1]
    %v589 = vld [vmem:[#allocation6 + $0x64] sm:$0x1]
    %v590 = vld [vmem:[#allocation6 + $0x74] sm:$0x1]
    %v591 = vld [vmem:[#allocation6 + $0x5] sm:$0x1]
    %v592 = vld [vmem:[#allocation6 + $0x15] sm:$0x1]
    %v593 = vld [vmem:[#allocation6 + $0x25] sm:$0x1]
    %v594 = vld [vmem:[#allocation6 + $0x35] sm:$0x1]
    %v595 = vld [vmem:[#allocation6 + $0x45] sm:$0x1]
    %v596 = vld [vmem:[#allocation6 + $0x55] sm:$0x1]
    %v597 = vld [vmem:[#allocation6 + $0x65] sm:$0x1]
    %v598 = vld [vmem:[#allocation6 + $0x75] sm:$0x1]
    %v607 = vrot.slane %v592, 7
    %v608 = vsel %vm190, %v607, %v591
    %v609 = vrot.slane %v593, 6
    %v610 = vsel %vm193, %v609, %v608
    %v611 = vrot.slane %v594, 5
    %v612 = vsel %vm196, %v611, %v610
    %v613 = vrot.slane %v595, 4
    %v614 = vsel %vm199, %v613, %v612
    %v615 = vrot.slane %v596, 3
    %v616 = vsel %vm202, %v615, %v614
    %v617 = vrot.slane %v597, 2
    %v618 = vsel %vm205, %v617, %v616
    %v619 = vrot.slane %v598, 1
    %v620 = vsel %vm208, %v619, %v618
    %v621 = vsel %vm210, %v620, 0
    %623 = vmatprep.subr.mxu0 0.0
    %624 = vmatpush1.msra.mxu0 %v123
    %625 = vmatprep.subr.mxu0 0.0
    %626 = vmatpush1.msra.mxu0 %v124
    %627 = vmatprep.subr.mxu0 0.0
    %628 = vmatpush1.msra.mxu0 0.0
    %629 = vmatprep.subr.mxu0 0.0
    %630 = vmatpush1.msra.mxu0 0.0
    %631 = vmatprep.subr.mxu0 0.0
    %632 = vmatpush1.msra.mxu0 0.0
    %633 = vmatprep.subr.mxu0 0.0
    %634 = vmatpush1.msra.mxu0 0.0
    %635 = vmatprep.subr.mxu0 0.0
    %636 = vmatpush1.msra.mxu0 0.0
    %637 = vmatprep.subr.mxu0 0.0
    %638 = vmatpush1.msra.mxu0 0.0
    %639 = vmatprep.subr.mxu0 0.0
    %640 = vmatpush1.msra.mxu0 0.0
    %641 = vmatprep.subr.mxu0 0.0
    %642 = vmatpush1.msra.mxu0 0.0
    %643 = vmatprep.subr.mxu0 0.0
    %644 = vmatpush1.msra.mxu0 0.0
    %645 = vmatprep.subr.mxu0 0.0
    %646 = vmatpush1.msra.mxu0 0.0
    %647 = vmatprep.subr.mxu0 0.0
    %648 = vmatpush1.msra.mxu0 0.0
    %649 = vmatprep.subr.mxu0 0.0
    %650 = vmatpush1.msra.mxu0 0.0
    %651 = vmatprep.subr.mxu0 0.0
    %652 = vmatpush1.msra.mxu0 0.0
    %653 = vmatprep.subr.mxu0 0.0
    %654 = vmatpush1.msra.mxu0 0.0
    %655 = vmatprep.subr.mxu0 0.0
    %656 = vmatpush1.msra.mxu0 0.0
    %657 = vmatprep.subr.mxu0 0.0
    %658 = vmatpush1.msra.mxu0 0.0
    %659 = vmatprep.subr.mxu0 0.0
    %660 = vmatpush1.msra.mxu0 0.0
    %661 = vmatprep.subr.mxu0 0.0
    %662 = vmatpush1.msra.mxu0 0.0
    %663 = vmatprep.subr.mxu0 0.0
    %664 = vmatpush1.msra.mxu0 0.0
    %665 = vmatprep.subr.mxu0 0.0
    %666 = vmatpush1.msra.mxu0 0.0
    %667 = vmatprep.subr.mxu0 0.0
    %668 = vmatpush1.msra.mxu0 0.0
    %669 = vmatprep.subr.mxu0 0.0
    %670 = vmatpush1.msra.mxu0 0.0
    %671 = vmatprep.subr.mxu0 0.0
    %672 = vmatpush1.msra.mxu0 0.0
    %673 = vmatprep.subr.mxu0 0.0
    %674 = vmatpush1.msra.mxu0 0.0
    %675 = vmatprep.subr.mxu0 0.0
    %676 = vmatpush1.msra.mxu0 0.0
    %677 = vmatprep.subr.mxu0 0.0
    %678 = vmatpush1.msra.mxu0 0.0
    %679 = vmatprep.subr.mxu0 0.0
    %680 = vmatpush1.msra.mxu0 0.0
    %681 = vmatprep.subr.mxu0 0.0
    %682 = vmatpush1.msra.mxu0 0.0
    %683 = vmatprep.subr.mxu0 0.0
    %684 = vmatpush1.msra.mxu0 0.0
    %685 = vmatprep.subr.mxu0 0.0
    %686 = vmatpush1.msra.mxu0 0.0
    %687 = vmatprep.mubr.f32.mxu0 0.0
    %688 = vmatmul.mubr.f32.gmra.mrb[0].mxu0 %v621
    %v689 = vpop.f32.mrb[0].mxu0
    %v690 = vadd.f32 0.0, %v689
    %v691 = vpop.f32.mrb[0].mxu0
    %692 = vdwg.mxu0
    %v701 = vrot.slane %v584, 7
    %v702 = vsel %vm190, %v701, %v583
    %v703 = vrot.slane %v585, 6
    %v704 = vsel %vm193, %v703, %v702
    %v705 = vrot.slane %v586, 5
    %v706 = vsel %vm196, %v705, %v704
    %v707 = vrot.slane %v587, 4
    %v708 = vsel %vm199, %v707, %v706
    %v709 = vrot.slane %v588, 3
    %v710 = vsel %vm202, %v709, %v708
    %v711 = vrot.slane %v589, 2
    %v712 = vsel %vm205, %v711, %v710
    %v713 = vrot.slane %v590, 1
    %v714 = vsel %vm208, %v713, %v712
    %v715 = vsel %vm210, %v714, 0
    %717 = vmatprep.subr.mxu0 0.0
    %718 = vmatpush1.msra.mxu0 %v103
    %719 = vmatprep.subr.mxu0 0.0
    %720 = vmatpush1.msra.mxu0 %v104
    %721 = vmatprep.subr.mxu0 0.0
    %722 = vmatpush1.msra.mxu0 0.0
    %723 = vmatprep.subr.mxu0 0.0
    %724 = vmatpush1.msra.mxu0 0.0
    %725 = vmatprep.subr.mxu0 0.0
    %726 = vmatpush1.msra.mxu0 0.0
    %727 = vmatprep.subr.mxu0 0.0
    %728 = vmatpush1.msra.mxu0 0.0
    %729 = vmatprep.subr.mxu0 0.0
    %730 = vmatpush1.msra.mxu0 0.0
    %731 = vmatprep.subr.mxu0 0.0
    %732 = vmatpush1.msra.mxu0 0.0
    %733 = vmatprep.subr.mxu0 0.0
    %734 = vmatpush1.msra.mxu0 0.0
    %735 = vmatprep.subr.mxu0 0.0
    %736 = vmatpush1.msra.mxu0 0.0
    %737 = vmatprep.subr.mxu0 0.0
    %738 = vmatpush1.msra.mxu0 0.0
    %739 = vmatprep.subr.mxu0 0.0
    %740 = vmatpush1.msra.mxu0 0.0
    %741 = vmatprep.subr.mxu0 0.0
    %742 = vmatpush1.msra.mxu0 0.0
    %743 = vmatprep.subr.mxu0 0.0
    %744 = vmatpush1.msra.mxu0 0.0
    %745 = vmatprep.subr.mxu0 0.0
    %746 = vmatpush1.msra.mxu0 0.0
    %747 = vmatprep.subr.mxu0 0.0
    %748 = vmatpush1.msra.mxu0 0.0
    %749 = vmatprep.subr.mxu0 0.0
    %750 = vmatpush1.msra.mxu0 0.0
    %751 = vmatprep.subr.mxu0 0.0
    %752 = vmatpush1.msra.mxu0 0.0
    %753 = vmatprep.subr.mxu0 0.0
    %754 = vmatpush1.msra.mxu0 0.0
    %755 = vmatprep.subr.mxu0 0.0
    %756 = vmatpush1.msra.mxu0 0.0
    %757 = vmatprep.subr.mxu0 0.0
    %758 = vmatpush1.msra.mxu0 0.0
    %759 = vmatprep.subr.mxu0 0.0
    %760 = vmatpush1.msra.mxu0 0.0
    %761 = vmatprep.subr.mxu0 0.0
    %762 = vmatpush1.msra.mxu0 0.0
    %763 = vmatprep.subr.mxu0 0.0
    %764 = vmatpush1.msra.mxu0 0.0
    %765 = vmatprep.subr.mxu0 0.0
    %766 = vmatpush1.msra.mxu0 0.0
    %767 = vmatprep.subr.mxu0 0.0
    %768 = vmatpush1.msra.mxu0 0.0
    %769 = vmatprep.subr.mxu0 0.0
    %770 = vmatpush1.msra.mxu0 0.0
    %771 = vmatprep.subr.mxu0 0.0
    %772 = vmatpush1.msra.mxu0 0.0
    %773 = vmatprep.subr.mxu0 0.0
    %774 = vmatpush1.msra.mxu0 0.0
    %775 = vmatprep.subr.mxu0 0.0
    %776 = vmatpush1.msra.mxu0 0.0
    %777 = vmatprep.subr.mxu0 0.0
    %778 = vmatpush1.msra.mxu0 0.0
    %779 = vmatprep.subr.mxu0 0.0
    %780 = vmatpush1.msra.mxu0 0.0
    %781 = vmatprep.mubr.f32.mxu0 0.0
    %782 = vmatmul.mubr.f32.gmra.mrb[0].mxu0 %v715
    %v783 = vpop.f32.mrb[0].mxu0
    %v784 = vadd.f32 %v690, %v783
    %v785 = vpop.f32.mrb[0].mxu0
    %786 = vdwg.mxu0
    %v787 = vld [vmem:[#allocation6 + $0x6] sm:$0x1]
    %v788 = vld [vmem:[#allocation6 + $0x16] sm:$0x1]
    %v789 = vld [vmem:[#allocation6 + $0x26] sm:$0x1]
    %v790 = vld [vmem:[#allocation6 + $0x36] sm:$0x1]
    %v791 = vld [vmem:[#allocation6 + $0x46] sm:$0x1]
    %v792 = vld [vmem:[#allocation6 + $0x56] sm:$0x1]
    %v793 = vld [vmem:[#allocation6 + $0x66] sm:$0x1]
    %v794 = vld [vmem:[#allocation6 + $0x76] sm:$0x1]
    %v803 = vrot.slane %v788, 7
    %v804 = vsel %vm190, %v803, %v787
    %v805 = vrot.slane %v789, 6
    %v806 = vsel %vm193, %v805, %v804
    %v807 = vrot.slane %v790, 5
    %v808 = vsel %vm196, %v807, %v806
    %v809 = vrot.slane %v791, 4
    %v810 = vsel %vm199, %v809, %v808
    %v811 = vrot.slane %v792, 3
    %v812 = vsel %vm202, %v811, %v810
    %v813 = vrot.slane %v793, 2
    %v814 = vsel %vm205, %v813, %v812
    %v815 = vrot.slane %v794, 1
    %v816 = vsel %vm208, %v815, %v814
    %v817 = vsel %vm210, %v816, 0
    %819 = vmatprep.subr.mxu0 0.0
    %820 = vmatpush1.msra.mxu0 %v143
    %821 = vmatprep.subr.mxu0 0.0
    %822 = vmatpush1.msra.mxu0 %v144
    %823 = vmatprep.subr.mxu0 0.0
    %824 = vmatpush1.msra.mxu0 0.0
    %825 = vmatprep.subr.mxu0 0.0
    %826 = vmatpush1.msra.mxu0 0.0
    %827 = vmatprep.subr.mxu0 0.0
    %828 = vmatpush1.msra.mxu0 0.0
    %829 = vmatprep.subr.mxu0 0.0
    %830 = vmatpush1.msra.mxu0 0.0
    %831 = vmatprep.subr.mxu0 0.0
    %832 = vmatpush1.msra.mxu0 0.0
    %833 = vmatprep.subr.mxu0 0.0
    %834 = vmatpush1.msra.mxu0 0.0
    %835 = vmatprep.subr.mxu0 0.0
    %836 = vmatpush1.msra.mxu0 0.0
    %837 = vmatprep.subr.mxu0 0.0
    %838 = vmatpush1.msra.mxu0 0.0
    %839 = vmatprep.subr.mxu0 0.0
    %840 = vmatpush1.msra.mxu0 0.0
    %841 = vmatprep.subr.mxu0 0.0
    %842 = vmatpush1.msra.mxu0 0.0
    %843 = vmatprep.subr.mxu0 0.0
    %844 = vmatpush1.msra.mxu0 0.0
    %845 = vmatprep.subr.mxu0 0.0
    %846 = vmatpush1.msra.mxu0 0.0
    %847 = vmatprep.subr.mxu0 0.0
    %848 = vmatpush1.msra.mxu0 0.0
    %849 = vmatprep.subr.mxu0 0.0
    %850 = vmatpush1.msra.mxu0 0.0
    %851 = vmatprep.subr.mxu0 0.0
    %852 = vmatpush1.msra.mxu0 0.0
    %853 = vmatprep.subr.mxu0 0.0
    %854 = vmatpush1.msra.mxu0 0.0
    %855 = vmatprep.subr.mxu0 0.0
    %856 = vmatpush1.msra.mxu0 0.0
    %857 = vmatprep.subr.mxu0 0.0
    %858 = vmatpush1.msra.mxu0 0.0
    %859 = vmatprep.subr.mxu0 0.0
    %860 = vmatpush1.msra.mxu0 0.0
    %861 = vmatprep.subr.mxu0 0.0
    %862 = vmatpush1.msra.mxu0 0.0
    %863 = vmatprep.subr.mxu0 0.0
    %864 = vmatpush1.msra.mxu0 0.0
    %865 = vmatprep.subr.mxu0 0.0
    %866 = vmatpush1.msra.mxu0 0.0
    %867 = vmatprep.subr.mxu0 0.0
    %868 = vmatpush1.msra.mxu0 0.0
    %869 = vmatprep.subr.mxu0 0.0
    %870 = vmatpush1.msra.mxu0 0.0
    %871 = vmatprep.subr.mxu0 0.0
    %872 = vmatpush1.msra.mxu0 0.0
    %873 = vmatprep.subr.mxu0 0.0
    %874 = vmatpush1.msra.mxu0 0.0
    %875 = vmatprep.subr.mxu0 0.0
    %876 = vmatpush1.msra.mxu0 0.0
    %877 = vmatprep.subr.mxu0 0.0
    %878 = vmatpush1.msra.mxu0 0.0
    %879 = vmatprep.subr.mxu0 0.0
    %880 = vmatpush1.msra.mxu0 0.0
    %881 = vmatprep.subr.mxu0 0.0
    %882 = vmatpush1.msra.mxu0 0.0
    %883 = vmatprep.mubr.f32.mxu0 0.0
    %884 = vmatmul.mubr.f32.gmra.mrb[0].mxu0 %v817
    %v885 = vpop.f32.mrb[0].mxu0
    %v886 = vadd.f32 0.0, %v885
    %v887 = vpop.f32.mrb[0].mxu0
    %888 = vdwg.mxu0
    %v889 = vadd.f32 %v784, %v886
    %v890 = vld [vmem:[#allocation6 + $0x7] sm:$0x1]
    %v891 = vld [vmem:[#allocation6 + $0x17] sm:$0x1]
    %v892 = vld [vmem:[#allocation6 + $0x27] sm:$0x1]
    %v893 = vld [vmem:[#allocation6 + $0x37] sm:$0x1]
    %v894 = vld [vmem:[#allocation6 + $0x47] sm:$0x1]
    %v895 = vld [vmem:[#allocation6 + $0x57] sm:$0x1]
    %v896 = vld [vmem:[#allocation6 + $0x67] sm:$0x1]
    %v897 = vld [vmem:[#allocation6 + $0x77] sm:$0x1]
    %v906 = vrot.slane %v891, 7
    %v907 = vsel %vm190, %v906, %v890
    %v908 = vrot.slane %v892, 6
    %v909 = vsel %vm193, %v908, %v907
    %v910 = vrot.slane %v893, 5
    %v911 = vsel %vm196, %v910, %v909
    %v912 = vrot.slane %v894, 4
    %v913 = vsel %vm199, %v912, %v911
    %v914 = vrot.slane %v895, 3
    %v915 = vsel %vm202, %v914, %v913
    %v916 = vrot.slane %v896, 2
    %v917 = vsel %vm205, %v916, %v915
    %v918 = vrot.slane %v897, 1
    %v919 = vsel %vm208, %v918, %v917
    %v920 = vsel %vm210, %v919, 0
    %922 = vmatprep.subr.mxu0 0.0
    %923 = vmatpush1.msra.mxu0 %v163
    %924 = vmatprep.subr.mxu0 0.0
    %925 = vmatpush1.msra.mxu0 %v164
    %926 = vmatprep.subr.mxu0 0.0
    %927 = vmatpush1.msra.mxu0 0.0
    %928 = vmatprep.subr.mxu0 0.0
    %929 = vmatpush1.msra.mxu0 0.0
    %930 = vmatprep.subr.mxu0 0.0
    %931 = vmatpush1.msra.mxu0 0.0
    %932 = vmatprep.subr.mxu0 0.0
    %933 = vmatpush1.msra.mxu0 0.0
    %934 = vmatprep.subr.mxu0 0.0
    %935 = vmatpush1.msra.mxu0 0.0
    %936 = vmatprep.subr.mxu0 0.0
    %937 = vmatpush1.msra.mxu0 0.0
    %938 = vmatprep.subr.mxu0 0.0
    %939 = vmatpush1.msra.mxu0 0.0
    %940 = vmatprep.subr.mxu0 0.0
    %941 = vmatpush1.msra.mxu0 0.0
    %942 = vmatprep.subr.mxu0 0.0
    %943 = vmatpush1.msra.mxu0 0.0
    %944 = vmatprep.subr.mxu0 0.0
    %945 = vmatpush1.msra.mxu0 0.0
    %946 = vmatprep.subr.mxu0 0.0
    %947 = vmatpush1.msra.mxu0 0.0
    %948 = vmatprep.subr.mxu0 0.0
    %949 = vmatpush1.msra.mxu0 0.0
    %950 = vmatprep.subr.mxu0 0.0
    %951 = vmatpush1.msra.mxu0 0.0
    %952 = vmatprep.subr.mxu0 0.0
    %953 = vmatpush1.msra.mxu0 0.0
    %954 = vmatprep.subr.mxu0 0.0
    %955 = vmatpush1.msra.mxu0 0.0
    %956 = vmatprep.subr.mxu0 0.0
    %957 = vmatpush1.msra.mxu0 0.0
    %958 = vmatprep.subr.mxu0 0.0
    %959 = vmatpush1.msra.mxu0 0.0
    %960 = vmatprep.subr.mxu0 0.0
    %961 = vmatpush1.msra.mxu0 0.0
    %962 = vmatprep.subr.mxu0 0.0
    %963 = vmatpush1.msra.mxu0 0.0
    %964 = vmatprep.subr.mxu0 0.0
    %965 = vmatpush1.msra.mxu0 0.0
    %966 = vmatprep.subr.mxu0 0.0
    %967 = vmatpush1.msra.mxu0 0.0
    %968 = vmatprep.subr.mxu0 0.0
    %969 = vmatpush1.msra.mxu0 0.0
    %970 = vmatprep.subr.mxu0 0.0
    %971 = vmatpush1.msra.mxu0 0.0
    %972 = vmatprep.subr.mxu0 0.0
    %973 = vmatpush1.msra.mxu0 0.0
    %974 = vmatprep.subr.mxu0 0.0
    %975 = vmatpush1.msra.mxu0 0.0
    %976 = vmatprep.subr.mxu0 0.0
    %977 = vmatpush1.msra.mxu0 0.0
    %978 = vmatprep.subr.mxu0 0.0
    %979 = vmatpush1.msra.mxu0 0.0
    %980 = vmatprep.subr.mxu0 0.0
    %981 = vmatpush1.msra.mxu0 0.0
    %982 = vmatprep.subr.mxu0 0.0
    %983 = vmatpush1.msra.mxu0 0.0
    %984 = vmatprep.subr.mxu0 0.0
    %985 = vmatpush1.msra.mxu0 0.0
    %986 = vmatprep.mubr.f32.mxu0 0.0
    %987 = vmatmul.mubr.f32.gmra.mrb[0].mxu0 %v920
    %v988 = vpop.f32.mrb[0].mxu0
    %v989 = vadd.f32 0.0, %v988
    %v990 = vpop.f32.mrb[0].mxu0
    %991 = vdwg.mxu0
    %v992 = vadd.f32 %v889, %v989
    %v993 = vld [vmem:[#allocation6 + $0x8] sm:$0x1]
    %v994 = vld [vmem:[#allocation6 + $0x18] sm:$0x1]
    %v995 = vld [vmem:[#allocation6 + $0x28] sm:$0x1]
    %v996 = vld [vmem:[#allocation6 + $0x38] sm:$0x1]
    %v997 = vld [vmem:[#allocation6 + $0x48] sm:$0x1]
    %v998 = vld [vmem:[#allocation6 + $0x58] sm:$0x1]
    %v999 = vld [vmem:[#allocation6 + $0x68] sm:$0x1]
    %v1000 = vld [vmem:[#allocation6 + $0x78] sm:$0x1]
    %v1001 = vld [vmem:[#allocation6 + $0x9] sm:$0x1]
    %v1002 = vld [vmem:[#allocation6 + $0x19] sm:$0x1]
    %v1003 = vld [vmem:[#allocation6 + $0x29] sm:$0x1]
    %v1004 = vld [vmem:[#allocation6 + $0x39] sm:$0x1]
    %v1005 = vld [vmem:[#allocation6 + $0x49] sm:$0x1]
    %v1006 = vld [vmem:[#allocation6 + $0x59] sm:$0x1]
    %v1007 = vld [vmem:[#allocation6 + $0x69] sm:$0x1]
    %v1008 = vld [vmem:[#allocation6 + $0x79] sm:$0x1]
    %v1017 = vrot.slane %v1002, 7
    %v1018 = vsel %vm190, %v1017, %v1001
    %v1019 = vrot.slane %v1003, 6
    %v1020 = vsel %vm193, %v1019, %v1018
    %v1021 = vrot.slane %v1004, 5
    %v1022 = vsel %vm196, %v1021, %v1020
    %v1023 = vrot.slane %v1005, 4
    %v1024 = vsel %vm199, %v1023, %v1022
    %v1025 = vrot.slane %v1006, 3
    %v1026 = vsel %vm202, %v1025, %v1024
    %v1027 = vrot.slane %v1007, 2
    %v1028 = vsel %vm205, %v1027, %v1026
    %v1029 = vrot.slane %v1008, 1
    %v1030 = vsel %vm208, %v1029, %v1028
    %v1031 = vsel %vm210, %v1030, 0
    %1033 = vmatprep.subr.mxu0 0.0
    %1034 = vmatpush1.msra.mxu0 %v123
    %1035 = vmatprep.subr.mxu0 0.0
    %1036 = vmatpush1.msra.mxu0 %v124
    %1037 = vmatprep.subr.mxu0 0.0
    %1038 = vmatpush1.msra.mxu0 0.0
    %1039 = vmatprep.subr.mxu0 0.0
    %1040 = vmatpush1.msra.mxu0 0.0
    %1041 = vmatprep.subr.mxu0 0.0
    %1042 = vmatpush1.msra.mxu0 0.0
    %1043 = vmatprep.subr.mxu0 0.0
    %1044 = vmatpush1.msra.mxu0 0.0
    %1045 = vmatprep.subr.mxu0 0.0
    %1046 = vmatpush1.msra.mxu0 0.0
    %1047 = vmatprep.subr.mxu0 0.0
    %1048 = vmatpush1.msra.mxu0 0.0
    %1049 = vmatprep.subr.mxu0 0.0
    %1050 = vmatpush1.msra.mxu0 0.0
    %1051 = vmatprep.subr.mxu0 0.0
    %1052 = vmatpush1.msra.mxu0 0.0
    %1053 = vmatprep.subr.mxu0 0.0
    %1054 = vmatpush1.msra.mxu0 0.0
    %1055 = vmatprep.subr.mxu0 0.0
    %1056 = vmatpush1.msra.mxu0 0.0
    %1057 = vmatprep.subr.mxu0 0.0
    %1058 = vmatpush1.msra.mxu0 0.0
    %1059 = vmatprep.subr.mxu0 0.0
    %1060 = vmatpush1.msra.mxu0 0.0
    %1061 = vmatprep.subr.mxu0 0.0
    %1062 = vmatpush1.msra.mxu0 0.0
    %1063 = vmatprep.subr.mxu0 0.0
    %1064 = vmatpush1.msra.mxu0 0.0
    %1065 = vmatprep.subr.mxu0 0.0
    %1066 = vmatpush1.msra.mxu0 0.0
    %1067 = vmatprep.subr.mxu0 0.0
    %1068 = vmatpush1.msra.mxu0 0.0
    %1069 = vmatprep.subr.mxu0 0.0
    %1070 = vmatpush1.msra.mxu0 0.0
    %1071 = vmatprep.subr.mxu0 0.0
    %1072 = vmatpush1.msra.mxu0 0.0
    %1073 = vmatprep.subr.mxu0 0.0
    %1074 = vmatpush1.msra.mxu0 0.0
    %1075 = vmatprep.subr.mxu0 0.0
    %1076 = vmatpush1.msra.mxu0 0.0
    %1077 = vmatprep.subr.mxu0 0.0
    %1078 = vmatpush1.msra.mxu0 0.0
    %1079 = vmatprep.subr.mxu0 0.0
    %1080 = vmatpush1.msra.mxu0 0.0
    %1081 = vmatprep.subr.mxu0 0.0
    %1082 = vmatpush1.msra.mxu0 0.0
    %1083 = vmatprep.subr.mxu0 0.0
    %1084 = vmatpush1.msra.mxu0 0.0
    %1085 = vmatprep.subr.mxu0 0.0
    %1086 = vmatpush1.msra.mxu0 0.0
    %1087 = vmatprep.subr.mxu0 0.0
    %1088 = vmatpush1.msra.mxu0 0.0
    %1089 = vmatprep.subr.mxu0 0.0
    %1090 = vmatpush1.msra.mxu0 0.0
    %1091 = vmatprep.subr.mxu0 0.0
    %1092 = vmatpush1.msra.mxu0 0.0
    %1093 = vmatprep.subr.mxu0 0.0
    %1094 = vmatpush1.msra.mxu0 0.0
    %1095 = vmatprep.subr.mxu0 0.0
    %1096 = vmatpush1.msra.mxu0 0.0
    %1097 = vmatprep.mubr.f32.mxu0 0.0
    %1098 = vmatmul.mubr.f32.gmra.mrb[0].mxu0 %v1031
    %v1099 = vpop.f32.mrb[0].mxu0
    %v1100 = vadd.f32 0.0, %v1099
    %v1101 = vpop.f32.mrb[0].mxu0
    %1102 = vdwg.mxu0
    %v1111 = vrot.slane %v994, 7
    %v1112 = vsel %vm190, %v1111, %v993
    %v1113 = vrot.slane %v995, 6
    %v1114 = vsel %vm193, %v1113, %v1112
    %v1115 = vrot.slane %v996, 5
    %v1116 = vsel %vm196, %v1115, %v1114
    %v1117 = vrot.slane %v997, 4
    %v1118 = vsel %vm199, %v1117, %v1116
    %v1119 = vrot.slane %v998, 3
    %v1120 = vsel %vm202, %v1119, %v1118
    %v1121 = vrot.slane %v999, 2
    %v1122 = vsel %vm205, %v1121, %v1120
    %v1123 = vrot.slane %v1000, 1
    %v1124 = vsel %vm208, %v1123, %v1122
    %v1125 = vsel %vm210, %v1124, 0
    %1127 = vmatprep.subr.mxu0 0.0
    %1128 = vmatpush1.msra.mxu0 %v103
    %1129 = vmatprep.subr.mxu0 0.0
    %1130 = vmatpush1.msra.mxu0 %v104
    %1131 = vmatprep.subr.mxu0 0.0
    %1132 = vmatpush1.msra.mxu0 0.0
    %1133 = vmatprep.subr.mxu0 0.0
    %1134 = vmatpush1.msra.mxu0 0.0
    %1135 = vmatprep.subr.mxu0 0.0
    %1136 = vmatpush1.msra.mxu0 0.0
    %1137 = vmatprep.subr.mxu0 0.0
    %1138 = vmatpush1.msra.mxu0 0.0
    %1139 = vmatprep.subr.mxu0 0.0
    %1140 = vmatpush1.msra.mxu0 0.0
    %1141 = vmatprep.subr.mxu0 0.0
    %1142 = vmatpush1.msra.mxu0 0.0
    %1143 = vmatprep.subr.mxu0 0.0
    %1144 = vmatpush1.msra.mxu0 0.0
    %1145 = vmatprep.subr.mxu0 0.0
    %1146 = vmatpush1.msra.mxu0 0.0
    %1147 = vmatprep.subr.mxu0 0.0
    %1148 = vmatpush1.msra.mxu0 0.0
    %1149 = vmatprep.subr.mxu0 0.0
    %1150 = vmatpush1.msra.mxu0 0.0
    %1151 = vmatprep.subr.mxu0 0.0
    %1152 = vmatpush1.msra.mxu0 0.0
    %1153 = vmatprep.subr.mxu0 0.0
    %1154 = vmatpush1.msra.mxu0 0.0
    %1155 = vmatprep.subr.mxu0 0.0
    %1156 = vmatpush1.msra.mxu0 0.0
    %1157 = vmatprep.subr.mxu0 0.0
    %1158 = vmatpush1.msra.mxu0 0.0
    %1159 = vmatprep.subr.mxu0 0.0
    %1160 = vmatpush1.msra.mxu0 0.0
    %1161 = vmatprep.subr.mxu0 0.0
    %1162 = vmatpush1.msra.mxu0 0.0
    %1163 = vmatprep.subr.mxu0 0.0
    %1164 = vmatpush1.msra.mxu0 0.0
    %1165 = vmatprep.subr.mxu0 0.0
    %1166 = vmatpush1.msra.mxu0 0.0
    %1167 = vmatprep.subr.mxu0 0.0
    %1168 = vmatpush1.msra.mxu0 0.0
    %1169 = vmatprep.subr.mxu0 0.0
    %1170 = vmatpush1.msra.mxu0 0.0
    %1171 = vmatprep.subr.mxu0 0.0
    %1172 = vmatpush1.msra.mxu0 0.0
    %1173 = vmatprep.subr.mxu0 0.0
    %1174 = vmatpush1.msra.mxu0 0.0
    %1175 = vmatprep.subr.mxu0 0.0
    %1176 = vmatpush1.msra.mxu0 0.0
    %1177 = vmatprep.subr.mxu0 0.0
    %1178 = vmatpush1.msra.mxu0 0.0
    %1179 = vmatprep.subr.mxu0 0.0
    %1180 = vmatpush1.msra.mxu0 0.0
    %1181 = vmatprep.subr.mxu0 0.0
    %1182 = vmatpush1.msra.mxu0 0.0
    %1183 = vmatprep.subr.mxu0 0.0
    %1184 = vmatpush1.msra.mxu0 0.0
    %1185 = vmatprep.subr.mxu0 0.0
    %1186 = vmatpush1.msra.mxu0 0.0
    %1187 = vmatprep.subr.mxu0 0.0
    %1188 = vmatpush1.msra.mxu0 0.0
    %1189 = vmatprep.subr.mxu0 0.0
    %1190 = vmatpush1.msra.mxu0 0.0
    %1191 = vmatprep.mubr.f32.mxu0 0.0
    %1192 = vmatmul.mubr.f32.gmra.mrb[0].mxu0 %v1125
    %v1193 = vpop.f32.mrb[0].mxu0
    %v1194 = vadd.f32 %v1100, %v1193
    %v1195 = vpop.f32.mrb[0].mxu0
    %1196 = vdwg.mxu0
    %v1197 = vld [vmem:[#allocation6 + $0xa] sm:$0x1]
    %v1198 = vld [vmem:[#allocation6 + $0x1a] sm:$0x1]
    %v1199 = vld [vmem:[#allocation6 + $0x2a] sm:$0x1]
    %v1200 = vld [vmem:[#allocation6 + $0x3a] sm:$0x1]
    %v1201 = vld [vmem:[#allocation6 + $0x4a] sm:$0x1]
    %v1202 = vld [vmem:[#allocation6 + $0x5a] sm:$0x1]
    %v1203 = vld [vmem:[#allocation6 + $0x6a] sm:$0x1]
    %v1204 = vld [vmem:[#allocation6 + $0x7a] sm:$0x1]
    %v1213 = vrot.slane %v1198, 7
    %v1214 = vsel %vm190, %v1213, %v1197
    %v1215 = vrot.slane %v1199, 6
    %v1216 = vsel %vm193, %v1215, %v1214
    %v1217 = vrot.slane %v1200, 5
    %v1218 = vsel %vm196, %v1217, %v1216
    %v1219 = vrot.slane %v1201, 4
    %v1220 = vsel %vm199, %v1219, %v1218
    %v1221 = vrot.slane %v1202, 3
    %v1222 = vsel %vm202, %v1221, %v1220
    %v1223 = vrot.slane %v1203, 2
    %v1224 = vsel %vm205, %v1223, %v1222
    %v1225 = vrot.slane %v1204, 1
    %v1226 = vsel %vm208, %v1225, %v1224
    %v1227 = vsel %vm210, %v1226, 0
    %1229 = vmatprep.subr.mxu0 0.0
    %1230 = vmatpush1.msra.mxu0 %v143
    %1231 = vmatprep.subr.mxu0 0.0
    %1232 = vmatpush1.msra.mxu0 %v144
    %1233 = vmatprep.subr.mxu0 0.0
    %1234 = vmatpush1.msra.mxu0 0.0
    %1235 = vmatprep.subr.mxu0 0.0
    %1236 = vmatpush1.msra.mxu0 0.0
    %1237 = vmatprep.subr.mxu0 0.0
    %1238 = vmatpush1.msra.mxu0 0.0
    %1239 = vmatprep.subr.mxu0 0.0
    %1240 = vmatpush1.msra.mxu0 0.0
    %1241 = vmatprep.subr.mxu0 0.0
    %1242 = vmatpush1.msra.mxu0 0.0
    %1243 = vmatprep.subr.mxu0 0.0
    %1244 = vmatpush1.msra.mxu0 0.0
    %1245 = vmatprep.subr.mxu0 0.0
    %1246 = vmatpush1.msra.mxu0 0.0
    %1247 = vmatprep.subr.mxu0 0.0
    %1248 = vmatpush1.msra.mxu0 0.0
    %1249 = vmatprep.subr.mxu0 0.0
    %1250 = vmatpush1.msra.mxu0 0.0
    %1251 = vmatprep.subr.mxu0 0.0
    %1252 = vmatpush1.msra.mxu0 0.0
    %1253 = vmatprep.subr.mxu0 0.0
    %1254 = vmatpush1.msra.mxu0 0.0
    %1255 = vmatprep.subr.mxu0 0.0
    %1256 = vmatpush1.msra.mxu0 0.0
    %1257 = vmatprep.subr.mxu0 0.0
    %1258 = vmatpush1.msra.mxu0 0.0
    %1259 = vmatprep.subr.mxu0 0.0
    %1260 = vmatpush1.msra.mxu0 0.0
    %1261 = vmatprep.subr.mxu0 0.0
    %1262 = vmatpush1.msra.mxu0 0.0
    %1263 = vmatprep.subr.mxu0 0.0
    %1264 = vmatpush1.msra.mxu0 0.0
    %1265 = vmatprep.subr.mxu0 0.0
    %1266 = vmatpush1.msra.mxu0 0.0
    %1267 = vmatprep.subr.mxu0 0.0
    %1268 = vmatpush1.msra.mxu0 0.0
    %1269 = vmatprep.subr.mxu0 0.0
    %1270 = vmatpush1.msra.mxu0 0.0
    %1271 = vmatprep.subr.mxu0 0.0
    %1272 = vmatpush1.msra.mxu0 0.0
    %1273 = vmatprep.subr.mxu0 0.0
    %1274 = vmatpush1.msra.mxu0 0.0
    %1275 = vmatprep.subr.mxu0 0.0
    %1276 = vmatpush1.msra.mxu0 0.0
    %1277 = vmatprep.subr.mxu0 0.0
    %1278 = vmatpush1.msra.mxu0 0.0
    %1279 = vmatprep.subr.mxu0 0.0
    %1280 = vmatpush1.msra.mxu0 0.0
    %1281 = vmatprep.subr.mxu0 0.0
    %1282 = vmatpush1.msra.mxu0 0.0
    %1283 = vmatprep.subr.mxu0 0.0
    %1284 = vmatpush1.msra.mxu0 0.0
    %1285 = vmatprep.subr.mxu0 0.0
    %1286 = vmatpush1.msra.mxu0 0.0
    %1287 = vmatprep.subr.mxu0 0.0
    %1288 = vmatpush1.msra.mxu0 0.0
    %1289 = vmatprep.subr.mxu0 0.0
    %1290 = vmatpush1.msra.mxu0 0.0
    %1291 = vmatprep.subr.mxu0 0.0
    %1292 = vmatpush1.msra.mxu0 0.0
    %1293 = vmatprep.mubr.f32.mxu0 0.0
    %1294 = vmatmul.mubr.f32.gmra.mrb[0].mxu0 %v1227
    %v1295 = vpop.f32.mrb[0].mxu0
    %v1296 = vadd.f32 0.0, %v1295
    %v1297 = vpop.f32.mrb[0].mxu0
    %1298 = vdwg.mxu0
    %v1299 = vadd.f32 %v1194, %v1296
    %v1300 = vld [vmem:[#allocation6 + $0xb] sm:$0x1]
    %v1301 = vld [vmem:[#allocation6 + $0x1b] sm:$0x1]
    %v1302 = vld [vmem:[#allocation6 + $0x2b] sm:$0x1]
    %v1303 = vld [vmem:[#allocation6 + $0x3b] sm:$0x1]
    %v1304 = vld [vmem:[#allocation6 + $0x4b] sm:$0x1]
    %v1305 = vld [vmem:[#allocation6 + $0x5b] sm:$0x1]
    %v1306 = vld [vmem:[#allocation6 + $0x6b] sm:$0x1]
    %v1307 = vld [vmem:[#allocation6 + $0x7b] sm:$0x1]
    %v1316 = vrot.slane %v1301, 7
    %v1317 = vsel %vm190, %v1316, %v1300
    %v1318 = vrot.slane %v1302, 6
    %v1319 = vsel %vm193, %v1318, %v1317
    %v1320 = vrot.slane %v1303, 5
    %v1321 = vsel %vm196, %v1320, %v1319
    %v1322 = vrot.slane %v1304, 4
    %v1323 = vsel %vm199, %v1322, %v1321
    %v1324 = vrot.slane %v1305, 3
    %v1325 = vsel %vm202, %v1324, %v1323
    %v1326 = vrot.slane %v1306, 2
    %v1327 = vsel %vm205, %v1326, %v1325
    %v1328 = vrot.slane %v1307, 1
    %v1329 = vsel %vm208, %v1328, %v1327
    %v1330 = vsel %vm210, %v1329, 0
    %1332 = vmatprep.subr.mxu0 0.0
    %1333 = vmatpush1.msra.mxu0 %v163
    %1334 = vmatprep.subr.mxu0 0.0
    %1335 = vmatpush1.msra.mxu0 %v164
    %1336 = vmatprep.subr.mxu0 0.0
    %1337 = vmatpush1.msra.mxu0 0.0
    %1338 = vmatprep.subr.mxu0 0.0
    %1339 = vmatpush1.msra.mxu0 0.0
    %1340 = vmatprep.subr.mxu0 0.0
    %1341 = vmatpush1.msra.mxu0 0.0
    %1342 = vmatprep.subr.mxu0 0.0
    %1343 = vmatpush1.msra.mxu0 0.0
    %1344 = vmatprep.subr.mxu0 0.0
    %1345 = vmatpush1.msra.mxu0 0.0
    %1346 = vmatprep.subr.mxu0 0.0
    %1347 = vmatpush1.msra.mxu0 0.0
    %1348 = vmatprep.subr.mxu0 0.0
    %1349 = vmatpush1.msra.mxu0 0.0
    %1350 = vmatprep.subr.mxu0 0.0
    %1351 = vmatpush1.msra.mxu0 0.0
    %1352 = vmatprep.subr.mxu0 0.0
    %1353 = vmatpush1.msra.mxu0 0.0
    %1354 = vmatprep.subr.mxu0 0.0
    %1355 = vmatpush1.msra.mxu0 0.0
    %1356 = vmatprep.subr.mxu0 0.0
    %1357 = vmatpush1.msra.mxu0 0.0
    %1358 = vmatprep.subr.mxu0 0.0
    %1359 = vmatpush1.msra.mxu0 0.0
    %1360 = vmatprep.subr.mxu0 0.0
    %1361 = vmatpush1.msra.mxu0 0.0
    %1362 = vmatprep.subr.mxu0 0.0
    %1363 = vmatpush1.msra.mxu0 0.0
    %1364 = vmatprep.subr.mxu0 0.0
    %1365 = vmatpush1.msra.mxu0 0.0
    %1366 = vmatprep.subr.mxu0 0.0
    %1367 = vmatpush1.msra.mxu0 0.0
    %1368 = vmatprep.subr.mxu0 0.0
    %1369 = vmatpush1.msra.mxu0 0.0
    %1370 = vmatprep.subr.mxu0 0.0
    %1371 = vmatpush1.msra.mxu0 0.0
    %1372 = vmatprep.subr.mxu0 0.0
    %1373 = vmatpush1.msra.mxu0 0.0
    %1374 = vmatprep.subr.mxu0 0.0
    %1375 = vmatpush1.msra.mxu0 0.0
    %1376 = vmatprep.subr.mxu0 0.0
    %1377 = vmatpush1.msra.mxu0 0.0
    %1378 = vmatprep.subr.mxu0 0.0
    %1379 = vmatpush1.msra.mxu0 0.0
    %1380 = vmatprep.subr.mxu0 0.0
    %1381 = vmatpush1.msra.mxu0 0.0
    %1382 = vmatprep.subr.mxu0 0.0
    %1383 = vmatpush1.msra.mxu0 0.0
    %1384 = vmatprep.subr.mxu0 0.0
    %1385 = vmatpush1.msra.mxu0 0.0
    %1386 = vmatprep.subr.mxu0 0.0
    %1387 = vmatpush1.msra.mxu0 0.0
    %1388 = vmatprep.subr.mxu0 0.0
    %1389 = vmatpush1.msra.mxu0 0.0
    %1390 = vmatprep.subr.mxu0 0.0
    %1391 = vmatpush1.msra.mxu0 0.0
    %1392 = vmatprep.subr.mxu0 0.0
    %1393 = vmatpush1.msra.mxu0 0.0
    %1394 = vmatprep.subr.mxu0 0.0
    %1395 = vmatpush1.msra.mxu0 0.0
    %1396 = vmatprep.mubr.f32.mxu0 0.0
    %1397 = vmatmul.mubr.f32.gmra.mrb[0].mxu0 %v1330
    %v1398 = vpop.f32.mrb[0].mxu0
    %v1399 = vadd.f32 0.0, %v1398
    %v1400 = vpop.f32.mrb[0].mxu0
    %1401 = vdwg.mxu0
    %v1402 = vadd.f32 %v1299, %v1399
    %v1403 = vld [vmem:[#allocation6 + $0xc] sm:$0x1]
    %v1404 = vld [vmem:[#allocation6 + $0x1c] sm:$0x1]
    %v1405 = vld [vmem:[#allocation6 + $0x2c] sm:$0x1]
    %v1406 = vld [vmem:[#allocation6 + $0x3c] sm:$0x1]
    %v1407 = vld [vmem:[#allocation6 + $0x4c] sm:$0x1]
    %v1408 = vld [vmem:[#allocation6 + $0x5c] sm:$0x1]
    %v1409 = vld [vmem:[#allocation6 + $0x6c] sm:$0x1]
    %v1410 = vld [vmem:[#allocation6 + $0x7c] sm:$0x1]
    %v1411 = vld [vmem:[#allocation6 + $0xd] sm:$0x1]
    %v1412 = vld [vmem:[#allocation6 + $0x1d] sm:$0x1]
    %v1413 = vld [vmem:[#allocation6 + $0x2d] sm:$0x1]
    %v1414 = vld [vmem:[#allocation6 + $0x3d] sm:$0x1]
    %v1415 = vld [vmem:[#allocation6 + $0x4d] sm:$0x1]
    %v1416 = vld [vmem:[#allocation6 + $0x5d] sm:$0x1]
    %v1417 = vld [vmem:[#allocation6 + $0x6d] sm:$0x1]
    %v1418 = vld [vmem:[#allocation6 + $0x7d] sm:$0x1]
    %v1427 = vrot.slane %v1412, 7
    %v1428 = vsel %vm190, %v1427, %v1411
    %v1429 = vrot.slane %v1413, 6
    %v1430 = vsel %vm193, %v1429, %v1428
    %v1431 = vrot.slane %v1414, 5
    %v1432 = vsel %vm196, %v1431, %v1430
    %v1433 = vrot.slane %v1415, 4
    %v1434 = vsel %vm199, %v1433, %v1432
    %v1435 = vrot.slane %v1416, 3
    %v1436 = vsel %vm202, %v1435, %v1434
    %v1437 = vrot.slane %v1417, 2
    %v1438 = vsel %vm205, %v1437, %v1436
    %v1439 = vrot.slane %v1418, 1
    %v1440 = vsel %vm208, %v1439, %v1438
    %v1441 = vsel %vm210, %v1440, 0
    %1443 = vmatprep.subr.mxu0 0.0
    %1444 = vmatpush1.msra.mxu0 %v123
    %1445 = vmatprep.subr.mxu0 0.0
    %1446 = vmatpush1.msra.mxu0 %v124
    %1447 = vmatprep.subr.mxu0 0.0
    %1448 = vmatpush1.msra.mxu0 0.0
    %1449 = vmatprep.subr.mxu0 0.0
    %1450 = vmatpush1.msra.mxu0 0.0
    %1451 = vmatprep.subr.mxu0 0.0
    %1452 = vmatpush1.msra.mxu0 0.0
    %1453 = vmatprep.subr.mxu0 0.0
    %1454 = vmatpush1.msra.mxu0 0.0
    %1455 = vmatprep.subr.mxu0 0.0
    %1456 = vmatpush1.msra.mxu0 0.0
    %1457 = vmatprep.subr.mxu0 0.0
    %1458 = vmatpush1.msra.mxu0 0.0
    %1459 = vmatprep.subr.mxu0 0.0
    %1460 = vmatpush1.msra.mxu0 0.0
    %1461 = vmatprep.subr.mxu0 0.0
    %1462 = vmatpush1.msra.mxu0 0.0
    %1463 = vmatprep.subr.mxu0 0.0
    %1464 = vmatpush1.msra.mxu0 0.0
    %1465 = vmatprep.subr.mxu0 0.0
    %1466 = vmatpush1.msra.mxu0 0.0
    %1467 = vmatprep.subr.mxu0 0.0
    %1468 = vmatpush1.msra.mxu0 0.0
    %1469 = vmatprep.subr.mxu0 0.0
    %1470 = vmatpush1.msra.mxu0 0.0
    %1471 = vmatprep.subr.mxu0 0.0
    %1472 = vmatpush1.msra.mxu0 0.0
    %1473 = vmatprep.subr.mxu0 0.0
    %1474 = vmatpush1.msra.mxu0 0.0
    %1475 = vmatprep.subr.mxu0 0.0
    %1476 = vmatpush1.msra.mxu0 0.0
    %1477 = vmatprep.subr.mxu0 0.0
    %1478 = vmatpush1.msra.mxu0 0.0
    %1479 = vmatprep.subr.mxu0 0.0
    %1480 = vmatpush1.msra.mxu0 0.0
    %1481 = vmatprep.subr.mxu0 0.0
    %1482 = vmatpush1.msra.mxu0 0.0
    %1483 = vmatprep.subr.mxu0 0.0
    %1484 = vmatpush1.msra.mxu0 0.0
    %1485 = vmatprep.subr.mxu0 0.0
    %1486 = vmatpush1.msra.mxu0 0.0
    %1487 = vmatprep.subr.mxu0 0.0
    %1488 = vmatpush1.msra.mxu0 0.0
    %1489 = vmatprep.subr.mxu0 0.0
    %1490 = vmatpush1.msra.mxu0 0.0
    %1491 = vmatprep.subr.mxu0 0.0
    %1492 = vmatpush1.msra.mxu0 0.0
    %1493 = vmatprep.subr.mxu0 0.0
    %1494 = vmatpush1.msra.mxu0 0.0
    %1495 = vmatprep.subr.mxu0 0.0
    %1496 = vmatpush1.msra.mxu0 0.0
    %1497 = vmatprep.subr.mxu0 0.0
    %1498 = vmatpush1.msra.mxu0 0.0
    %1499 = vmatprep.subr.mxu0 0.0
    %1500 = vmatpush1.msra.mxu0 0.0
    %1501 = vmatprep.subr.mxu0 0.0
    %1502 = vmatpush1.msra.mxu0 0.0
    %1503 = vmatprep.subr.mxu0 0.0
    %1504 = vmatpush1.msra.mxu0 0.0
    %1505 = vmatprep.subr.mxu0 0.0
    %1506 = vmatpush1.msra.mxu0 0.0
    %1507 = vmatprep.mubr.f32.mxu0 0.0
    %1508 = vmatmul.mubr.f32.gmra.mrb[0].mxu0 %v1441
    %v1509 = vpop.f32.mrb[0].mxu0
    %v1510 = vadd.f32 0.0, %v1509
    %v1511 = vpop.f32.mrb[0].mxu0
    %1512 = vdwg.mxu0
    %v1521 = vrot.slane %v1404, 7
    %v1522 = vsel %vm190, %v1521, %v1403
    %v1523 = vrot.slane %v1405, 6
    %v1524 = vsel %vm193, %v1523, %v1522
    %v1525 = vrot.slane %v1406, 5
    %v1526 = vsel %vm196, %v1525, %v1524
    %v1527 = vrot.slane %v1407, 4
    %v1528 = vsel %vm199, %v1527, %v1526
    %v1529 = vrot.slane %v1408, 3
    %v1530 = vsel %vm202, %v1529, %v1528
    %v1531 = vrot.slane %v1409, 2
    %v1532 = vsel %vm205, %v1531, %v1530
    %v1533 = vrot.slane %v1410, 1
    %v1534 = vsel %vm208, %v1533, %v1532
    %v1535 = vsel %vm210, %v1534, 0
    %1537 = vmatprep.subr.mxu0 0.0
    %1538 = vmatpush1.msra.mxu0 %v103
    %1539 = vmatprep.subr.mxu0 0.0
    %1540 = vmatpush1.msra.mxu0 %v104
    %1541 = vmatprep.subr.mxu0 0.0
    %1542 = vmatpush1.msra.mxu0 0.0
    %1543 = vmatprep.subr.mxu0 0.0
    %1544 = vmatpush1.msra.mxu0 0.0
    %1545 = vmatprep.subr.mxu0 0.0
    %1546 = vmatpush1.msra.mxu0 0.0
    %1547 = vmatprep.subr.mxu0 0.0
    %1548 = vmatpush1.msra.mxu0 0.0
    %1549 = vmatprep.subr.mxu0 0.0
    %1550 = vmatpush1.msra.mxu0 0.0
    %1551 = vmatprep.subr.mxu0 0.0
    %1552 = vmatpush1.msra.mxu0 0.0
    %1553 = vmatprep.subr.mxu0 0.0
    %1554 = vmatpush1.msra.mxu0 0.0
    %1555 = vmatprep.subr.mxu0 0.0
    %1556 = vmatpush1.msra.mxu0 0.0
    %1557 = vmatprep.subr.mxu0 0.0
    %1558 = vmatpush1.msra.mxu0 0.0
    %1559 = vmatprep.subr.mxu0 0.0
    %1560 = vmatpush1.msra.mxu0 0.0
    %1561 = vmatprep.subr.mxu0 0.0
    %1562 = vmatpush1.msra.mxu0 0.0
    %1563 = vmatprep.subr.mxu0 0.0
    %1564 = vmatpush1.msra.mxu0 0.0
    %1565 = vmatprep.subr.mxu0 0.0
    %1566 = vmatpush1.msra.mxu0 0.0
    %1567 = vmatprep.subr.mxu0 0.0
    %1568 = vmatpush1.msra.mxu0 0.0
    %1569 = vmatprep.subr.mxu0 0.0
    %1570 = vmatpush1.msra.mxu0 0.0
    %1571 = vmatprep.subr.mxu0 0.0
    %1572 = vmatpush1.msra.mxu0 0.0
    %1573 = vmatprep.subr.mxu0 0.0
    %1574 = vmatpush1.msra.mxu0 0.0
    %1575 = vmatprep.subr.mxu0 0.0
    %1576 = vmatpush1.msra.mxu0 0.0
    %1577 = vmatprep.subr.mxu0 0.0
    %1578 = vmatpush1.msra.mxu0 0.0
    %1579 = vmatprep.subr.mxu0 0.0
    %1580 = vmatpush1.msra.mxu0 0.0
    %1581 = vmatprep.subr.mxu0 0.0
    %1582 = vmatpush1.msra.mxu0 0.0
    %1583 = vmatprep.subr.mxu0 0.0
    %1584 = vmatpush1.msra.mxu0 0.0
    %1585 = vmatprep.subr.mxu0 0.0
    %1586 = vmatpush1.msra.mxu0 0.0
    %1587 = vmatprep.subr.mxu0 0.0
    %1588 = vmatpush1.msra.mxu0 0.0
    %1589 = vmatprep.subr.mxu0 0.0
    %1590 = vmatpush1.msra.mxu0 0.0
    %1591 = vmatprep.subr.mxu0 0.0
    %1592 = vmatpush1.msra.mxu0 0.0
    %1593 = vmatprep.subr.mxu0 0.0
    %1594 = vmatpush1.msra.mxu0 0.0
    %1595 = vmatprep.subr.mxu0 0.0
    %1596 = vmatpush1.msra.mxu0 0.0
    %1597 = vmatprep.subr.mxu0 0.0
    %1598 = vmatpush1.msra.mxu0 0.0
    %1599 = vmatprep.subr.mxu0 0.0
    %1600 = vmatpush1.msra.mxu0 0.0
    %1601 = vmatprep.mubr.f32.mxu0 0.0
    %1602 = vmatmul.mubr.f32.gmra.mrb[0].mxu0 %v1535
    %v1603 = vpop.f32.mrb[0].mxu0
    %v1604 = vadd.f32 %v1510, %v1603
    %v1605 = vpop.f32.mrb[0].mxu0
    %1606 = vdwg.mxu0
    %v1607 = vld [vmem:[#allocation6 + $0xe] sm:$0x1]
    %v1608 = vld [vmem:[#allocation6 + $0x1e] sm:$0x1]
    %v1609 = vld [vmem:[#allocation6 + $0x2e] sm:$0x1]
    %v1610 = vld [vmem:[#allocation6 + $0x3e] sm:$0x1]
    %v1611 = vld [vmem:[#allocation6 + $0x4e] sm:$0x1]
    %v1612 = vld [vmem:[#allocation6 + $0x5e] sm:$0x1]
    %v1613 = vld [vmem:[#allocation6 + $0x6e] sm:$0x1]
    %v1614 = vld [vmem:[#allocation6 + $0x7e] sm:$0x1]
    %v1623 = vrot.slane %v1608, 7
    %v1624 = vsel %vm190, %v1623, %v1607
    %v1625 = vrot.slane %v1609, 6
    %v1626 = vsel %vm193, %v1625, %v1624
    %v1627 = vrot.slane %v1610, 5
    %v1628 = vsel %vm196, %v1627, %v1626
    %v1629 = vrot.slane %v1611, 4
    %v1630 = vsel %vm199, %v1629, %v1628
    %v1631 = vrot.slane %v1612, 3
    %v1632 = vsel %vm202, %v1631, %v1630
    %v1633 = vrot.slane %v1613, 2
    %v1634 = vsel %vm205, %v1633, %v1632
    %v1635 = vrot.slane %v1614, 1
    %v1636 = vsel %vm208, %v1635, %v1634
    %v1637 = vsel %vm210, %v1636, 0
    %1639 = vmatprep.subr.mxu0 0.0
    %1640 = vmatpush1.msra.mxu0 %v143
    %1641 = vmatprep.subr.mxu0 0.0
    %1642 = vmatpush1.msra.mxu0 %v144
    %1643 = vmatprep.subr.mxu0 0.0
    %1644 = vmatpush1.msra.mxu0 0.0
    %1645 = vmatprep.subr.mxu0 0.0
    %1646 = vmatpush1.msra.mxu0 0.0
    %1647 = vmatprep.subr.mxu0 0.0
    %1648 = vmatpush1.msra.mxu0 0.0
    %1649 = vmatprep.subr.mxu0 0.0
    %1650 = vmatpush1.msra.mxu0 0.0
    %1651 = vmatprep.subr.mxu0 0.0
    %1652 = vmatpush1.msra.mxu0 0.0
    %1653 = vmatprep.subr.mxu0 0.0
    %1654 = vmatpush1.msra.mxu0 0.0
    %1655 = vmatprep.subr.mxu0 0.0
    %1656 = vmatpush1.msra.mxu0 0.0
    %1657 = vmatprep.subr.mxu0 0.0
    %1658 = vmatpush1.msra.mxu0 0.0
    %1659 = vmatprep.subr.mxu0 0.0
    %1660 = vmatpush1.msra.mxu0 0.0
    %1661 = vmatprep.subr.mxu0 0.0
    %1662 = vmatpush1.msra.mxu0 0.0
    %1663 = vmatprep.subr.mxu0 0.0
    %1664 = vmatpush1.msra.mxu0 0.0
    %1665 = vmatprep.subr.mxu0 0.0
    %1666 = vmatpush1.msra.mxu0 0.0
    %1667 = vmatprep.subr.mxu0 0.0
    %1668 = vmatpush1.msra.mxu0 0.0
    %1669 = vmatprep.subr.mxu0 0.0
    %1670 = vmatpush1.msra.mxu0 0.0
    %1671 = vmatprep.subr.mxu0 0.0
    %1672 = vmatpush1.msra.mxu0 0.0
    %1673 = vmatprep.subr.mxu0 0.0
    %1674 = vmatpush1.msra.mxu0 0.0
    %1675 = vmatprep.subr.mxu0 0.0
    %1676 = vmatpush1.msra.mxu0 0.0
    %1677 = vmatprep.subr.mxu0 0.0
    %1678 = vmatpush1.msra.mxu0 0.0
    %1679 = vmatprep.subr.mxu0 0.0
    %1680 = vmatpush1.msra.mxu0 0.0
    %1681 = vmatprep.subr.mxu0 0.0
    %1682 = vmatpush1.msra.mxu0 0.0
    %1683 = vmatprep.subr.mxu0 0.0
    %1684 = vmatpush1.msra.mxu0 0.0
    %1685 = vmatprep.subr.mxu0 0.0
    %1686 = vmatpush1.msra.mxu0 0.0
    %1687 = vmatprep.subr.mxu0 0.0
    %1688 = vmatpush1.msra.mxu0 0.0
    %1689 = vmatprep.subr.mxu0 0.0
    %1690 = vmatpush1.msra.mxu0 0.0
    %1691 = vmatprep.subr.mxu0 0.0
    %1692 = vmatpush1.msra.mxu0 0.0
    %1693 = vmatprep.subr.mxu0 0.0
    %1694 = vmatpush1.msra.mxu0 0.0
    %1695 = vmatprep.subr.mxu0 0.0
    %1696 = vmatpush1.msra.mxu0 0.0
    %1697 = vmatprep.subr.mxu0 0.0
    %1698 = vmatpush1.msra.mxu0 0.0
    %1699 = vmatprep.subr.mxu0 0.0
    %1700 = vmatpush1.msra.mxu0 0.0
    %1701 = vmatprep.subr.mxu0 0.0
    %1702 = vmatpush1.msra.mxu0 0.0
    %1703 = vmatprep.mubr.f32.mxu0 0.0
    %1704 = vmatmul.mubr.f32.gmra.mrb[0].mxu0 %v1637
    %v1705 = vpop.f32.mrb[0].mxu0
    %v1706 = vadd.f32 0.0, %v1705
    %v1707 = vpop.f32.mrb[0].mxu0
    %1708 = vdwg.mxu0
    %v1709 = vadd.f32 %v1604, %v1706
    %v1710 = vld [vmem:[#allocation6 + $0xf] sm:$0x1]
    %v1711 = vld [vmem:[#allocation6 + $0x1f] sm:$0x1]
    %v1712 = vld [vmem:[#allocation6 + $0x2f] sm:$0x1]
    %v1713 = vld [vmem:[#allocation6 + $0x3f] sm:$0x1]
    %v1714 = vld [vmem:[#allocation6 + $0x4f] sm:$0x1]
    %v1715 = vld [vmem:[#allocation6 + $0x5f] sm:$0x1]
    %v1716 = vld [vmem:[#allocation6 + $0x6f] sm:$0x1]
    %v1717 = vld [vmem:[#allocation6 + $0x7f] sm:$0x1]
    %v1726 = vrot.slane %v1711, 7
    %v1727 = vsel %vm190, %v1726, %v1710
    %v1728 = vrot.slane %v1712, 6
    %v1729 = vsel %vm193, %v1728, %v1727
    %v1730 = vrot.slane %v1713, 5
    %v1731 = vsel %vm196, %v1730, %v1729
    %v1732 = vrot.slane %v1714, 4
    %v1733 = vsel %vm199, %v1732, %v1731
    %v1734 = vrot.slane %v1715, 3
    %v1735 = vsel %vm202, %v1734, %v1733
    %v1736 = vrot.slane %v1716, 2
    %v1737 = vsel %vm205, %v1736, %v1735
    %v1738 = vrot.slane %v1717, 1
    %v1739 = vsel %vm208, %v1738, %v1737
    %v1740 = vsel %vm210, %v1739, 0
    %1742 = vmatprep.subr.mxu0 0.0
    %1743 = vmatpush1.msra.mxu0 %v163
    %1744 = vmatprep.subr.mxu0 0.0
    %1745 = vmatpush1.msra.mxu0 %v164
    %1746 = vmatprep.subr.mxu0 0.0
    %1747 = vmatpush1.msra.mxu0 0.0
    %1748 = vmatprep.subr.mxu0 0.0
    %1749 = vmatpush1.msra.mxu0 0.0
    %1750 = vmatprep.subr.mxu0 0.0
    %1751 = vmatpush1.msra.mxu0 0.0
    %1752 = vmatprep.subr.mxu0 0.0
    %1753 = vmatpush1.msra.mxu0 0.0
    %1754 = vmatprep.subr.mxu0 0.0
    %1755 = vmatpush1.msra.mxu0 0.0
    %1756 = vmatprep.subr.mxu0 0.0
    %1757 = vmatpush1.msra.mxu0 0.0
    %1758 = vmatprep.subr.mxu0 0.0
    %1759 = vmatpush1.msra.mxu0 0.0
    %1760 = vmatprep.subr.mxu0 0.0
    %1761 = vmatpush1.msra.mxu0 0.0
    %1762 = vmatprep.subr.mxu0 0.0
    %1763 = vmatpush1.msra.mxu0 0.0
    %1764 = vmatprep.subr.mxu0 0.0
    %1765 = vmatpush1.msra.mxu0 0.0
    %1766 = vmatprep.subr.mxu0 0.0
    %1767 = vmatpush1.msra.mxu0 0.0
    %1768 = vmatprep.subr.mxu0 0.0
    %1769 = vmatpush1.msra.mxu0 0.0
    %1770 = vmatprep.subr.mxu0 0.0
    %1771 = vmatpush1.msra.mxu0 0.0
    %1772 = vmatprep.subr.mxu0 0.0
    %1773 = vmatpush1.msra.mxu0 0.0
    %1774 = vmatprep.subr.mxu0 0.0
    %1775 = vmatpush1.msra.mxu0 0.0
    %1776 = vmatprep.subr.mxu0 0.0
    %1777 = vmatpush1.msra.mxu0 0.0
    %1778 = vmatprep.subr.mxu0 0.0
    %1779 = vmatpush1.msra.mxu0 0.0
    %1780 = vmatprep.subr.mxu0 0.0
    %1781 = vmatpush1.msra.mxu0 0.0
    %1782 = vmatprep.subr.mxu0 0.0
    %1783 = vmatpush1.msra.mxu0 0.0
    %1784 = vmatprep.subr.mxu0 0.0
    %1785 = vmatpush1.msra.mxu0 0.0
    %1786 = vmatprep.subr.mxu0 0.0
    %1787 = vmatpush1.msra.mxu0 0.0
    %1788 = vmatprep.subr.mxu0 0.0
    %1789 = vmatpush1.msra.mxu0 0.0
    %1790 = vmatprep.subr.mxu0 0.0
    %1791 = vmatpush1.msra.mxu0 0.0
    %1792 = vmatprep.subr.mxu0 0.0
    %1793 = vmatpush1.msra.mxu0 0.0
    %1794 = vmatprep.subr.mxu0 0.0
    %1795 = vmatpush1.msra.mxu0 0.0
    %1796 = vmatprep.subr.mxu0 0.0
    %1797 = vmatpush1.msra.mxu0 0.0
    %1798 = vmatprep.subr.mxu0 0.0
    %1799 = vmatpush1.msra.mxu0 0.0
    %1800 = vmatprep.subr.mxu0 0.0
    %1801 = vmatpush1.msra.mxu0 0.0
    %1802 = vmatprep.subr.mxu0 0.0
    %1803 = vmatpush1.msra.mxu0 0.0
    %1804 = vmatprep.subr.mxu0 0.0
    %1805 = vmatpush1.msra.mxu0 0.0
    %1806 = vmatprep.mubr.f32.mxu0 0.0
    %1807 = vmatmul.mubr.f32.gmra.mrb[0].mxu0 %v1740
    %v1808 = vpop.f32.mrb[0].mxu0
    %v1809 = vadd.f32 0.0, %v1808
    %v1810 = vpop.f32.mrb[0].mxu0
    %1811 = vdwg.mxu0
    %v1812 = vadd.f32 %v1709, %v1809
    %1814 = vrot.lane.b32.xlu0 %v992, 4
    %v1815 = vpop.permute.xlu0 %1814
    %1818 = vrot.lane.b32.xlu0 %v1402, 8
    %v1819 = vpop.permute.xlu0 %1818
    %1822 = vrot.lane.b32.xlu0 %v1812, 12
    %v1823 = vpop.permute.xlu0 %1822
    %vm1825 = vcmask 31744
    %v1826 = vsel %vm1825, %v582, %v1815
    %vm1827 = vcmask 64512
    %v1828 = vsel %vm1827, %v1826, %v1819
    %vm1829 = vcmask 97280
    %v1830 = vsel %vm1829, %v1828, %v1823
    %1831 = vst.msk [vmem:[#allocation7] sm:$0xff] %vm210, %v1830
    // Predicated region
    $region18: #{tpu_custom_call.1} parent=1 // pred_check
      _
    $region19: #{tpu_custom_call.1} parent=1 // pred_check_branch
      %1833 = sbr.rel (0) target = $region21
    $region20: #{tpu_custom_call.1} parent=1 // pred_region
      %s1835 = ssub.s32 128, 128
      %1836 = vsyncadd [#allocation4], %s1835
      %s1838 = sshll.u32 [#allocation7], 4
      %s1839 = int_to_ptr.vmem [resolvable:$true] %s1838
      %1841 = dma.vmem_to_hbm [thread:$0]  %s1839, 128, %s2, [#allocation4]
    $region21: #{tpu_custom_call.1} parent=1 // pred_fallthru
      _
    // Predicated region
    $region22: #{tpu_custom_call.1} parent=1 // pred_check
      _
    $region23: #{tpu_custom_call.1} parent=1 // pred_check_branch
      %1843 = sbr.rel (0) target = $region25
    $region24: #{tpu_custom_call.1} parent=1 // pred_region
      %1844 = dma.done [#allocation4], 128
    $region25: #{tpu_custom_call.1} parent=1 // pred_fallthru
      _
    %1845 = vsyncpa [#allocation3], 1
    %1846 = vsyncpa [#allocation4], 1
    %1847 = vsyncpa [#allocation5], 1

</llo_original>
